<compile_context>
chip_gen: v6e
topology: v6e:2x2x1
jax: 0.10.0
libtpu: 0.0.40
codegen_flags: <defaults>
</compile_context>

<pallas_src>
import functools

import jax
import jax.numpy as jnp
from jax import lax
from jax.experimental import pallas as pl
from jax.experimental.pallas import tpu as pltpu

DR_RATE = 0.5
KEEP_PROB = 1.0 - DR_RATE


def _round_up(x, m):
    return ((x + m - 1) // m) * m


def _pick_tile(total, candidates, prefer_multi):
    if prefer_multi:
        for c in candidates:
            if total % c == 0 and total // c >= 2:
                return c
    for c in candidates:
        if total % c == 0:
            return c
    return total


def _bert_classifier_kernel(tmax_ref,           # [n_batch_tiles] int32 (scalar prefetch, SMEM)
                            tok_ref, seg_ref,   # [TB, TS] int32
                            vl_ref,             # [TB, 1] int32 (clamped to S on host)
                            table_ref,          # [VT, H] compute dtype (word rows + zero pad)
                            wp_ref, bp_ref,     # [H, H] cd, [1, H] f32
                            segemb_ref,         # [NSEG, H] f32
                            wc_ref, bc_ref,     # [H, CP] cd, [1, CP] f32  (lane padded)
                            *rest,
                            apply_dropout, pad_row, num_seg):
    if apply_dropout:
        drop_ref, out_ref, counts_ref, segcnt_ref = rest
    else:
        out_ref, counts_ref, segcnt_ref = rest
        drop_ref = None

    bi = pl.program_id(0)
    si = pl.program_id(1)
    TB, TS = tok_ref.shape
    VT = counts_ref.shape[1]

    # ---- reset accumulators at the start of each batch tile -----------------
    @pl.when(si == 0)
    def _():
        counts_ref[...] = jnp.zeros_like(counts_ref)
        segcnt_ref[...] = jnp.zeros_like(segcnt_ref)

    # ---- skip sequence tiles entirely past this batch tile's longest row ----
    @pl.when(si * TS < tmax_ref[bi])
    def _():
        vl_col = vl_ref[...]                                        # [TB, 1]
        pos = si * TS + lax.broadcasted_iota(jnp.int32, (TB, TS), 1)
        valid = pos < vl_col                                        # gen_attention_mask
        # Padded positions -> zero table row: unweighted counts stay exact.
        tok = jnp.where(valid, tok_ref[...], pad_row)               # [TB, TS]
        # TODO(synk): for TS*VT tiles larger than a few MiB (v7x 64MiB VMEM),
        #             chunk this reduction with an inner lax.fori_loop.
        vt_iota = lax.broadcasted_iota(jnp.int32, (TB, TS, VT), 2)
        counts_ref[...] += jnp.sum(
            (vt_iota == tok[:, :, None]).astype(jnp.int32), axis=1)  # [TB, VT] int32
        # Segment ids take only `num_seg` values: count them directly instead
        # of a one-hot over VT.  seg==0 count is derived from n_valid later.
        if num_seg > 1:
            seg = seg_ref[...]
            hits = [jnp.sum((valid & (seg == j)).astype(jnp.int32),
                            axis=1, keepdims=True)
                    for j in range(1, num_seg)]                      # each [TB, 1]
            segcnt_ref[...] += jnp.concatenate(hits, axis=1)

    # ---- epilogue on the last sequence tile: pool, pooler, dropout, classify
    @pl.when(si == pl.num_programs(1) - 1)
    def _():
        n_valid = vl_ref[...]                                       # [TB,1] int32 (<= S)
        denom = jnp.maximum(n_valid, 1).astype(jnp.float32)

        # One MXU matmul per batch tile turns counts into the masked token-emb sum.
        emb_sum = jnp.dot(counts_ref[...].astype(table_ref.dtype), table_ref[...],
                          preferred_element_type=jnp.float32)       # [TB, H]

        # Segment-embedding contribution from the tiny per-segment counts.
        segcnt = segcnt_ref[...]                                    # [TB, NSEG-1]
        seg0 = (n_valid - jnp.sum(segcnt, axis=1, keepdims=True)).astype(jnp.float32)
        seg_sum = seg0 * segemb_ref[0:1, :]
        for j in range(1, num_seg):
            seg_sum = seg_sum + (segcnt[:, j - 1:j].astype(jnp.float32)
                                 * segemb_ref[j:j + 1, :])

        pooled = (emb_sum + seg_sum) / denom                        # masked mean pool
        pooler = jnp.tanh(
            jnp.dot(pooled.astype(wp_ref.dtype), wp_ref[...],
                    preferred_element_type=jnp.float32) + bp_ref[...])
        if apply_dropout:
            pooler = pooler * drop_ref[...]                         # keep-mask * 1/keep_prob
        logits = (jnp.dot(pooler.astype(wc_ref.dtype), wc_ref[...],
                          preferred_element_type=jnp.float32) + bc_ref[...])
        out_ref[...] = logits.astype(out_ref.dtype)


def bert_classifier_forward(token_ids, valid_length, segment_ids, params, *,
                            train=False, dropout_rng=None,
                            compute_dtype=jnp.bfloat16):
    B, S = token_ids.shape
    V, H = params["word_emb"].shape
    NSEG = params["seg_emb"].shape[0]
    C = params["wc"].shape[1]

    # Lane-dense padded sizes. VT has at least one all-zero row (the pad row).
    CP = _round_up(C, 128)
    VT = _round_up(V + 1, 128)
    PAD_ROW = V

    # Host-side padding so tiles always satisfy the (8,128) divisibility rule.
    B_pad = _round_up(B, 8)
    S_pad = _round_up(S, 128)
    TB = _pick_tile(B_pad, (128, 64, 32, 16, 8), prefer_multi=True)   # >=2 tiles for v7x
    TS = _pick_tile(S_pad, (512, 256, 128), prefer_multi=False)

    tok = jnp.zeros((B_pad, S_pad), jnp.int32).at[:B, :S].set(token_ids.astype(jnp.int32))
    seg = jnp.zeros((B_pad, S_pad), jnp.int32).at[:B, :S].set(segment_ids.astype(jnp.int32))
    vl = jnp.zeros((B_pad,), jnp.int32).at[:B].set(
        jnp.minimum(valid_length.astype(jnp.int32), S))
    vl2d = vl.reshape(B_pad, 1)
    tile_max_vl = vl.reshape(B_pad // TB, TB).max(axis=1)             # skip predicate

    # Tables / weights. Matmul operands in compute_dtype (bf16 default); biases
    # and the tiny segment table stay f32 on the VPU side.
    table = jnp.zeros((VT, H), compute_dtype).at[:V].set(params["word_emb"].astype(compute_dtype))
    seg_emb = params["seg_emb"].astype(jnp.float32)
    wp = params["wp"].astype(compute_dtype)
    bp = params["bp"].reshape(1, H).astype(jnp.float32)
    wc = jnp.zeros((H, CP), compute_dtype).at[:, :C].set(params["wc"].astype(compute_dtype))
    bc = jnp.zeros((1, CP), jnp.float32).at[:, :C].set(params["bc"].reshape(1, C).astype(jnp.float32))

    # Dropout (p=0.5): compiled out entirely at inference.
    if train:
        if dropout_rng is None:
            dropout_rng = jax.random.PRNGKey(0)
        keep = jax.random.bernoulli(dropout_rng, KEEP_PROB, (B_pad, H))
        extra_inputs = (keep.astype(jnp.float32) / KEEP_PROB,)
        extra_specs = (pl.BlockSpec((TB, H), lambda b, s, tm: (b, 0)),)
    else:
        extra_inputs = ()
        extra_specs = ()

    kernel = functools.partial(_bert_classifier_kernel, apply_dropout=train,
                               pad_row=PAD_ROW, num_seg=NSEG)

    grid_spec = pltpu.PrefetchScalarGridSpec(
        num_scalar_prefetch=1,
        grid=(B_pad // TB, S_pad // TS),
        in_specs=[
            pl.BlockSpec((TB, TS), lambda b, s, tm: (b, s)),    # token ids
            pl.BlockSpec((TB, TS), lambda b, s, tm: (b, s)),    # segment ids
            pl.BlockSpec((TB, 1), lambda b, s, tm: (b, 0)),     # valid_length column
            pl.BlockSpec((VT, H), lambda b, s, tm: (0, 0)),     # word-emb table (resident)
            pl.BlockSpec((H, H), lambda b, s, tm: (0, 0)),      # pooler weight
            pl.BlockSpec((1, H), lambda b, s, tm: (0, 0)),      # pooler bias
            pl.BlockSpec((NSEG, H), lambda b, s, tm: (0, 0)),   # segment embedding
            pl.BlockSpec((H, CP), lambda b, s, tm: (0, 0)),     # classifier weight (padded)
            pl.BlockSpec((1, CP), lambda b, s, tm: (0, 0)),     # classifier bias (padded)
            *extra_specs,                                       # dropout keep/scale (train only)
        ],
        out_specs=pl.BlockSpec((TB, CP), lambda b, s, tm: (b, 0)),
        scratch_shapes=[pltpu.VMEM((TB, VT), jnp.int32),        # token one-hot counts
                        pltpu.VMEM((TB, max(NSEG - 1, 1)), jnp.int32)],  # segment counts
    )

    logits_padded = pl.pallas_call(
        kernel,
        out_shape=jax.ShapeDtypeStruct((B_pad, CP), jnp.float32),
        grid_spec=grid_spec,
        compiler_params=pltpu.CompilerParams(
            dimension_semantics=("parallel", "arbitrary")),
    )(tile_max_vl, tok, seg, vl2d, table, wp, bp, seg_emb, wc, bc, *extra_inputs)

    return logits_padded[:B, :C]


def reference_forward(token_ids, valid_length, segment_ids, params, drop_scale=None):
    """Pure-JAX f32 reference of the same stand-in forward pass."""
    B, S = token_ids.shape
    pos = jnp.arange(S)[None, :]
    mask = (pos < valid_length[:, None]).astype(jnp.float32)
    x = params["word_emb"][token_ids] + params["seg_emb"][segment_ids]
    denom = jnp.maximum(mask.sum(-1, keepdims=True), 1.0)
    pooled = (x * mask[..., None]).sum(1) / denom
    pooler = jnp.tanh(pooled @ params["wp"] + params["bp"])
    if drop_scale is not None:
        pooler = pooler * drop_scale
    return pooler @ params["wc"] + params["bc"]


def init_params(key, vocab=64, hidden=128, num_classes=4, num_segments=2):
    k0, k1, k2, k3 = jax.random.split(key, 4)
    return {
        "word_emb": 0.02 * jax.random.normal(k0, (vocab, hidden), jnp.float32),
        "seg_emb": 0.02 * jax.random.normal(k1, (num_segments, hidden), jnp.float32),
        "wp": (1.0 / jnp.sqrt(hidden)) * jax.random.normal(k2, (hidden, hidden), jnp.float32),
        "bp": jnp.zeros((hidden,), jnp.float32),
        "wc": (1.0 / jnp.sqrt(hidden)) * jax.random.normal(k3, (hidden, num_classes), jnp.float32),
        "bc": jnp.zeros((num_classes,), jnp.float32),
    }


if __name__ == "__main__":
    B, S, H, C, V = 16, 256, 128, 4, 64

    key = jax.random.PRNGKey(0)
    kp, kt, ks, kv = jax.random.split(key, 4)
    params = init_params(kp, vocab=V, hidden=H, num_classes=C)

    token_ids = jax.random.randint(kt, (B, S), 0, V, dtype=jnp.int32)
    segment_ids = jax.random.randint(ks, (B, S), 0, 2, dtype=jnp.int32)
    valid_length = jax.random.randint(kv, (B,), 1, S + 1, dtype=jnp.int32)

    ref = reference_forward(token_ids, valid_length, segment_ids, params)

    # Exact-dtype check (f32 matmul operands): tight tolerance.
    logits_f32 = bert_classifier_forward(token_ids, valid_length, segment_ids,
                                         params, train=False,
                                         compute_dtype=jnp.float32)
    jax.block_until_ready(logits_f32)
    assert logits_f32.shape == (B, C) and logits_f32.dtype == jnp.float32
    assert jnp.allclose(logits_f32, ref, atol=1e-4, rtol=1e-4), \
        float(jnp.max(jnp.abs(logits_f32 - ref)))

    # Default perf config (bf16 matmul operands on the MXU).
    logits = bert_classifier_forward(token_ids, valid_length, segment_ids,
                                     params, train=False)
    jax.block_until_ready(logits)
    assert logits.shape == (B, C) and logits.dtype == jnp.float32
    assert jnp.allclose(logits, ref, atol=5e-3, rtol=5e-2), \
        float(jnp.max(jnp.abs(logits - ref)))

    print("KERNEL_OK")
</pallas_src>

<mosaic_0001>
module attributes {stable_mosaic.version = 11 : i64} {
  func.func @_bert_classifier_kernel(%arg0: i32, %arg1: i32, %arg2: memref<2xi32, #tpu.memory_space<smem>>, %arg3: memref<8x256xi32, #tpu.memory_space<vmem>>, %arg4: memref<8x256xi32, #tpu.memory_space<vmem>>, %arg5: memref<8x1xi32, #tpu.memory_space<vmem>>, %arg6: memref<128x128xf32, #tpu.memory_space<vmem>>, %arg7: memref<128x128xf32, #tpu.memory_space<vmem>>, %arg8: memref<1x128xf32, #tpu.memory_space<vmem>>, %arg9: memref<2x128xf32, #tpu.memory_space<vmem>>, %arg10: memref<128x128xf32, #tpu.memory_space<vmem>>, %arg11: memref<1x128xf32, #tpu.memory_space<vmem>>, %arg12: memref<8x128xf32, #tpu.memory_space<vmem>>, %arg13: memref<8x128xi32, #tpu.memory_space<vmem>>, %arg14: memref<8x1xi32, #tpu.memory_space<vmem>>) attributes {dimension_semantics = [#tpu.dimension_semantics<parallel>, #tpu.dimension_semantics<arbitrary>], iteration_bounds = array<i64: 2, 1>, scalar_prefetch = 1 : i64, scratch_operands = 2 : i64, tpu.core_type = #tpu.core_type<tc>, window_params = [{transform_indices = @transform_0, window_bounds = array<i64: 8, 256>}, {transform_indices = @transform_1, window_bounds = array<i64: 8, 256>}, {transform_indices = @transform_2, window_bounds = array<i64: 8, 1>}, {pipeline_mode = #tpu.pipeline_mode<synchronous>, transform_indices = @transform_3, window_bounds = array<i64: 128, 128>}, {pipeline_mode = #tpu.pipeline_mode<synchronous>, transform_indices = @transform_4, window_bounds = array<i64: 128, 128>}, {pipeline_mode = #tpu.pipeline_mode<synchronous>, transform_indices = @transform_5, window_bounds = array<i64: 1, 128>}, {pipeline_mode = #tpu.pipeline_mode<synchronous>, transform_indices = @transform_6, window_bounds = array<i64: 2, 128>}, {pipeline_mode = #tpu.pipeline_mode<synchronous>, transform_indices = @transform_7, window_bounds = array<i64: 128, 128>}, {pipeline_mode = #tpu.pipeline_mode<synchronous>, transform_indices = @transform_8, window_bounds = array<i64: 1, 128>}, {transform_indices = @transform_9, window_bounds = array<i64: 8, 128>}]} {
    %c0_i32 = arith.constant 0 : i32
    %0 = arith.cmpi eq, %arg1, %c0_i32 : i32
    %1 = arith.extui %0 : i1 to i32
    %c0_i32_0 = arith.constant 0 : i32
    %2 = arith.cmpi ne, %1, %c0_i32_0 : i32
    scf.if %2 {
      %c0_i32_4 = arith.constant 0 : i32
      %12 = vector.broadcast %c0_i32_4 : i32 to vector<8x128xi32>
      %c0 = arith.constant 0 : index
      %c0_5 = arith.constant 0 : index
      %13 = vector.load %arg13[%c0, %c0_5] : memref<8x128xi32, #tpu.memory_space<vmem>>, vector<8x128xi32>
      tpu.vector_store %arg13[%c0, %c0_5], %12 {strides = array<i32>} : memref<8x128xi32, #tpu.memory_space<vmem>>, vector<8x128xi32>,
      %c0_i32_6 = arith.constant 0 : i32
      %14 = vector.broadcast %c0_i32_6 : i32 to vector<8x1xi32>
      %c0_7 = arith.constant 0 : index
      %c0_8 = arith.constant 0 : index
      %15 = vector.load %arg14[%c0_7, %c0_8] : memref<8x1xi32, #tpu.memory_space<vmem>>, vector<8x1xi32>
      tpu.vector_store %arg14[%c0_7, %c0_8], %14 {strides = array<i32>} : memref<8x1xi32, #tpu.memory_space<vmem>>, vector<8x1xi32>,
    } else {
    }
    %c256_i32 = arith.constant 256 : i32
    %3 = arith.muli %arg1, %c256_i32 : i32
    %4 = arith.index_cast %arg0 : i32 to index
    %5 = memref.load %arg2[%4] : memref<2xi32, #tpu.memory_space<smem>>
    %6 = arith.cmpi slt, %3, %5 : i32
    %7 = arith.extui %6 : i1 to i32
    %c0_i32_1 = arith.constant 0 : i32
    %8 = arith.cmpi ne, %7, %c0_i32_1 : i32
    scf.if %8 {
      %c0 = arith.constant 0 : index
      %c0_4 = arith.constant 0 : index
      %12 = vector.load %arg5[%c0, %c0_4] : memref<8x1xi32, #tpu.memory_space<vmem>>, vector<8x1xi32>
      %c256_i32_5 = arith.constant 256 : i32
      %13 = arith.muli %arg1, %c256_i32_5 : i32
      %14 = tpu.iota {dimensions = array<i32: 1>} : vector<8x256xi32>
      %15 = vector.broadcast %13 : i32 to vector<8x256xi32>
      %16 = arith.addi %15, %14 : vector<8x256xi32>
      %17 = vector.broadcast %12 : vector<8x1xi32> to vector<8x256xi32>
      %18 = arith.cmpi slt, %16, %17 : vector<8x256xi32>
      %c0_6 = arith.constant 0 : index
      %c0_7 = arith.constant 0 : index
      %19 = vector.load %arg3[%c0_6, %c0_7] : memref<8x256xi32, #tpu.memory_space<vmem>>, vector<8x256xi32>
      %c64_i32 = arith.constant 64 : i32
      %20 = vector.broadcast %c64_i32 : i32 to vector<8x256xi32>
      %21 = arith.select %18, %19, %20 : vector<8x256xi1>, vector<8x256xi32>
      %22 = tpu.iota {dimensions = array<i32: 2>} : vector<8x256x128xi32>
      %c0_8 = arith.constant 0 : index
      %c0_9 = arith.constant 0 : index
      %23 = vector.load %arg13[%c0_8, %c0_9] : memref<8x128xi32, #tpu.memory_space<vmem>>, vector<8x128xi32>
      %24 = vector.shape_cast %21 : vector<8x256xi32> to vector<8x256x1xi32>
      %25 = vector.broadcast %24 : vector<8x256x1xi32> to vector<8x256x128xi32>
      %26 = arith.cmpi eq, %22, %25 : vector<8x256x128xi32>
      %27 = arith.extui %26 : vector<8x256x128xi1> to vector<8x256x128xi32>
      %cst = arith.constant dense<0> : vector<8x128xi32>
      %28 = vector.multi_reduction <add>, %27, %cst [1] : vector<8x256x128xi32> to vector<8x128xi32>
      %29 = arith.addi %23, %28 : vector<8x128xi32>
      %c0_10 = arith.constant 0 : index
      %c0_11 = arith.constant 0 : index
      %30 = vector.load %arg13[%c0_10, %c0_11] : memref<8x128xi32, #tpu.memory_space<vmem>>, vector<8x128xi32>
      tpu.vector_store %arg13[%c0_10, %c0_11], %29 {strides = array<i32>} : memref<8x128xi32, #tpu.memory_space<vmem>>, vector<8x128xi32>,
      %c0_12 = arith.constant 0 : index
      %c0_13 = arith.constant 0 : index
      %31 = vector.load %arg4[%c0_12, %c0_13] : memref<8x256xi32, #tpu.memory_space<vmem>>, vector<8x256xi32>
      %c1_i32 = arith.constant 1 : i32
      %32 = vector.broadcast %c1_i32 : i32 to vector<8x256xi32>
      %33 = arith.cmpi eq, %31, %32 : vector<8x256xi32>
      %34 = arith.andi %18, %33 : vector<8x256xi1>
      %35 = arith.extui %34 : vector<8x256xi1> to vector<8x256xi32>
      %cst_14 = arith.constant dense<0> : vector<8xi32>
      %36 = vector.multi_reduction <add>, %35, %cst_14 [1] : vector<8x256xi32> to vector<8xi32>
      %37 = vector.shape_cast %36 : vector<8xi32> to vector<8x1xi32>
      %c0_15 = arith.constant 0 : index
      %c0_16 = arith.constant 0 : index
      %38 = vector.load %arg14[%c0_15, %c0_16] : memref<8x1xi32, #tpu.memory_space<vmem>>, vector<8x1xi32>
      %39 = arith.addi %38, %37 : vector<8x1xi32>
      %c0_17 = arith.constant 0 : index
      %c0_18 = arith.constant 0 : index
      %40 = vector.load %arg14[%c0_17, %c0_18] : memref<8x1xi32, #tpu.memory_space<vmem>>, vector<8x1xi32>
      tpu.vector_store %arg14[%c0_17, %c0_18], %39 {strides = array<i32>} : memref<8x1xi32, #tpu.memory_space<vmem>>, vector<8x1xi32>,
    } else {
    }
    %c0_i32_2 = arith.constant 0 : i32
    %9 = arith.cmpi eq, %arg1, %c0_i32_2 : i32
    %10 = arith.extui %9 : i1 to i32
    %c0_i32_3 = arith.constant 0 : i32
    %11 = arith.cmpi ne, %10, %c0_i32_3 : i32
    scf.if %11 {
      %c0 = arith.constant 0 : index
      %c0_4 = arith.constant 0 : index
      %12 = vector.load %arg5[%c0, %c0_4] : memref<8x1xi32, #tpu.memory_space<vmem>>, vector<8x1xi32>
      %c1_i32 = arith.constant 1 : i32
      %13 = vector.broadcast %c1_i32 : i32 to vector<8x1xi32>
      %14 = arith.maxsi %12, %13 : vector<8x1xi32>
      %15 = arith.sitofp %14 : vector<8x1xi32> to vector<8x1xf32>
      %c0_5 = arith.constant 0 : index
      %c0_6 = arith.constant 0 : index
      %16 = vector.load %arg13[%c0_5, %c0_6] : memref<8x128xi32, #tpu.memory_space<vmem>>, vector<8x128xi32>
      %17 = arith.sitofp %16 : vector<8x128xi32> to vector<8x128xf32>
      %c0_7 = arith.constant 0 : index
      %c0_8 = arith.constant 0 : index
      %18 = vector.load %arg6[%c0_7, %c0_8] : memref<128x128xf32, #tpu.memory_space<vmem>>, vector<128x128xf32>
      %cst = arith.constant dense<0.000000e+00> : vector<8x128xf32>
      %19 = tpu.matmul %17, %18, %cst {dimension_numbers = #tpu.dot_dimension_numbers<[1], [0], [0], [1], [0, 0, 1, 1], [], []>} : vector<8x128xf32>, vector<128x128xf32>, vector<8x128xf32> -> vector<8x128xf32>
      %c0_9 = arith.constant 0 : index
      %c0_10 = arith.constant 0 : index
      %20 = vector.load %arg14[%c0_9, %c0_10] : memref<8x1xi32, #tpu.memory_space<vmem>>, vector<8x1xi32>
      %cst_11 = arith.constant dense<0> : vector<8xi32>
      %21 = vector.multi_reduction <add>, %20, %cst_11 [1] : vector<8x1xi32> to vector<8xi32>
      %22 = vector.shape_cast %21 : vector<8xi32> to vector<8x1xi32>
      %23 = arith.subi %12, %22 : vector<8x1xi32>
      %24 = arith.sitofp %23 : vector<8x1xi32> to vector<8x1xf32>
      %c0_12 = arith.constant 0 : index
      %c0_13 = arith.constant 0 : index
      %25 = vector.load %arg9[%c0_12, %c0_13] : memref<2x128xf32, #tpu.memory_space<vmem>>, vector<1x128xf32>
      %26 = vector.broadcast %24 : vector<8x1xf32> to vector<8x128xf32>
      %27 = vector.broadcast %25 : vector<1x128xf32> to vector<8x128xf32>
      %28 = arith.mulf %26, %27 : vector<8x128xf32>
      %29 = arith.sitofp %20 : vector<8x1xi32> to vector<8x1xf32>
      %c1 = arith.constant 1 : index
      %c0_14 = arith.constant 0 : index
      %30 = vector.load %arg9[%c1, %c0_14] : memref<2x128xf32, #tpu.memory_space<vmem>>, vector<1x128xf32>
      %31 = vector.broadcast %29 : vector<8x1xf32> to vector<8x128xf32>
      %32 = vector.broadcast %30 : vector<1x128xf32> to vector<8x128xf32>
      %33 = arith.mulf %31, %32 : vector<8x128xf32>
      %34 = arith.addf %28, %33 : vector<8x128xf32>
      %35 = arith.addf %19, %34 : vector<8x128xf32>
      %36 = vector.broadcast %15 : vector<8x1xf32> to vector<8x128xf32>
      %37 = arith.divf %35, %36 : vector<8x128xf32>
      %c0_15 = arith.constant 0 : index
      %c0_16 = arith.constant 0 : index
      %38 = vector.load %arg7[%c0_15, %c0_16] : memref<128x128xf32, #tpu.memory_space<vmem>>, vector<128x128xf32>
      %cst_17 = arith.constant dense<0.000000e+00> : vector<8x128xf32>
      %39 = tpu.matmul %37, %38, %cst_17 {dimension_numbers = #tpu.dot_dimension_numbers<[1], [0], [0], [1], [0, 0, 1, 1], [], []>} : vector<8x128xf32>, vector<128x128xf32>, vector<8x128xf32> -> vector<8x128xf32>
      %c0_18 = arith.constant 0 : index
      %c0_19 = arith.constant 0 : index
      %40 = vector.load %arg8[%c0_18, %c0_19] : memref<1x128xf32, #tpu.memory_space<vmem>>, vector<1x128xf32>
      %41 = vector.broadcast %40 : vector<1x128xf32> to vector<8x128xf32>
      %42 = arith.addf %39, %41 : vector<8x128xf32>
      %43 = math.tanh %42 : vector<8x128xf32>
      %c0_20 = arith.constant 0 : index
      %c0_21 = arith.constant 0 : index
      %44 = vector.load %arg10[%c0_20, %c0_21] : memref<128x128xf32, #tpu.memory_space<vmem>>, vector<128x128xf32>
      %cst_22 = arith.constant dense<0.000000e+00> : vector<8x128xf32>
      %45 = tpu.matmul %43, %44, %cst_22 {dimension_numbers = #tpu.dot_dimension_numbers<[1], [0], [0], [1], [0, 0, 1, 1], [], []>} : vector<8x128xf32>, vector<128x128xf32>, vector<8x128xf32> -> vector<8x128xf32>
      %c0_23 = arith.constant 0 : index
      %c0_24 = arith.constant 0 : index
      %46 = vector.load %arg11[%c0_23, %c0_24] : memref<1x128xf32, #tpu.memory_space<vmem>>, vector<1x128xf32>
      %47 = vector.broadcast %46 : vector<1x128xf32> to vector<8x128xf32>
      %48 = arith.addf %45, %47 : vector<8x128xf32>
      %c0_25 = arith.constant 0 : index
      %c0_26 = arith.constant 0 : index
      %49 = vector.load %arg12[%c0_25, %c0_26] : memref<8x128xf32, #tpu.memory_space<vmem>>, vector<8x128xf32>
      tpu.vector_store %arg12[%c0_25, %c0_26], %48 {strides = array<i32>} : memref<8x128xf32, #tpu.memory_space<vmem>>, vector<8x128xf32>,
    } else {
    }
    return
  }
  func.func @transform_0(%arg0: i32, %arg1: i32, %arg2: memref<2xi32, #tpu.memory_space<smem>>) -> (i32, i32) {
    %c0_i32 = arith.constant 0 : i32
    return %arg0, %arg1 : i32, i32
  }
  func.func @transform_1(%arg0: i32, %arg1: i32, %arg2: memref<2xi32, #tpu.memory_space<smem>>) -> (i32, i32) {
    %c0_i32 = arith.constant 0 : i32
    return %arg0, %arg1 : i32, i32
  }
  func.func @transform_2(%arg0: i32, %arg1: i32, %arg2: memref<2xi32, #tpu.memory_space<smem>>) -> (i32, i32) {
    %c0_i32 = arith.constant 0 : i32
    %c0_i32_0 = arith.constant 0 : i32
    return %arg0, %c0_i32 : i32, i32
  }
  func.func @transform_3(%arg0: i32, %arg1: i32, %arg2: memref<2xi32, #tpu.memory_space<smem>>) -> (i32, i32) {
    %c0_i32 = arith.constant 0 : i32
    %c0_i32_0 = arith.constant 0 : i32
    %c0_i32_1 = arith.constant 0 : i32
    return %c0_i32, %c0_i32_0 : i32, i32
  }
  func.func @transform_4(%arg0: i32, %arg1: i32, %arg2: memref<2xi32, #tpu.memory_space<smem>>) -> (i32, i32) {
    %c0_i32 = arith.constant 0 : i32
    %c0_i32_0 = arith.constant 0 : i32
    %c0_i32_1 = arith.constant 0 : i32
    return %c0_i32, %c0_i32_0 : i32, i32
  }
  func.func @transform_5(%arg0: i32, %arg1: i32, %arg2: memref<2xi32, #tpu.memory_space<smem>>) -> (i32, i32) {
    %c0_i32 = arith.constant 0 : i32
    %c0_i32_0 = arith.constant 0 : i32
    %c0_i32_1 = arith.constant 0 : i32
    return %c0_i32, %c0_i32_0 : i32, i32
  }
  func.func @transform_6(%arg0: i32, %arg1: i32, %arg2: memref<2xi32, #tpu.memory_space<smem>>) -> (i32, i32) {
    %c0_i32 = arith.constant 0 : i32
    %c0_i32_0 = arith.constant 0 : i32
    %c0_i32_1 = arith.constant 0 : i32
    return %c0_i32, %c0_i32_0 : i32, i32
  }
  func.func @transform_7(%arg0: i32, %arg1: i32, %arg2: memref<2xi32, #tpu.memory_space<smem>>) -> (i32, i32) {
    %c0_i32 = arith.constant 0 : i32
    %c0_i32_0 = arith.constant 0 : i32
    %c0_i32_1 = arith.constant 0 : i32
    return %c0_i32, %c0_i32_0 : i32, i32
  }
  func.func @transform_8(%arg0: i32, %arg1: i32, %arg2: memref<2xi32, #tpu.memory_space<smem>>) -> (i32, i32) {
    %c0_i32 = arith.constant 0 : i32
    %c0_i32_0 = arith.constant 0 : i32
    %c0_i32_1 = arith.constant 0 : i32
    return %c0_i32, %c0_i32_0 : i32, i32
  }
  func.func @transform_9(%arg0: i32, %arg1: i32, %arg2: memref<2xi32, #tpu.memory_space<smem>>) -> (i32, i32) {
    %c0_i32 = arith.constant 0 : i32
    %c0_i32_0 = arith.constant 0 : i32
    return %arg0, %c0_i32 : i32, i32
  }
}

</mosaic_0001>

<llo_original>
// kernel: tpu_custom_call.1
$region0: #{tpu_custom_call.1}
  #allocation0 [shape = 'u32[]', space=smem, size = 0x4, offset = 0x4, fixed_abs, tag = 'smem constant byte address 0x4 - core index']
  #allocation1 [shape = 'u32[144,128]{1,0:T(1,128)}', space=vmem, size = 0x12000, scoped, tag = 'internal scratch']
  #allocation2 [shape = 's32[8,128]{1,0:T(8,128)}', space=vmem, size = 0x1000, scoped, tag = 'scratch operand']
  #allocation3 [shape = 's32[8,1]{1,0:T(8,128)}', space=vmem, size = 0x1000, scoped, tag = 'scratch operand']
  #allocation4 [shape = 's32[1]{0}', space=sflag, size = 0x4, scoped, tag = 'scoped memory for tpu_custom_call.1']
  #allocation5 [shape = 'u8[512]{0}', space=smem, size = 0x200, scoped, tag = 'prefetched SMEM operand 0']
  %s0 = inlined_call_operand.vmem [shape: s32[2], index: 0, kind: input, shape index: {}]
  %s1 = inlined_call_operand.hbm [shape: s32[16,256], index: 1, kind: input, shape index: {}]
  %s2 = inlined_call_operand.hbm [shape: s32[16,256], index: 2, kind: input, shape index: {}]
  %s3 = inlined_call_operand.vmem [shape: s32[16,1], index: 3, kind: input, shape index: {}]
  %s4 = inlined_call_operand.hbm [shape: f32[128,128], index: 4, kind: input, shape index: {}]
  %s5 = inlined_call_operand.hbm [shape: f32[128,128], index: 5, kind: input, shape index: {}]
  %s6 = inlined_call_operand.vmem [shape: f32[1,128], index: 6, kind: input, shape index: {}]
  %s7 = inlined_call_operand.vmem [shape: f32[2,128], index: 7, kind: input, shape index: {}]
  %s8 = inlined_call_operand.hbm [shape: f32[128,128], index: 8, kind: input, shape index: {}]
  %s9 = inlined_call_operand.vmem [shape: f32[1,128], index: 9, kind: input, shape index: {}]
  %s10 = inlined_call_operand.hbm [shape: f32[16,128], index: 10, kind: output, shape index: {}]
  %s11 = sld [smem:[#allocation0]]
  $region101: #{tpu_custom_call.1} parent=0
    _
  %s13 = ssub.s32 1, %s11
  %s14 = scalar_select 0, %s13, %s11
  %s15 = sshll.u32 %s0, 4
  %s16 = int_to_ptr.vmem [resolvable:$true] %s15
  %18 = dma.vmem_to_smem %s16, 16, [#allocation5], [#allocation4]
  %19 = dma.done [#allocation4], 16
  %20 = sfence
  $region1: #{tpu_custom_call.1} parent=0
    #allocation6 [shape = 'u8[16384]{0}', space=vmem, size = 0x4000, scoped, tag = 'input window, operand 1']
    #allocation7 [shape = 's32[2]{0}', space=sflag, size = 0x8, scoped, tag = 'scoped memory for tpu_custom_call.1']
    #allocation8 [shape = 's32[2]{0}', space=sflag, size = 0x8, scoped, tag = 'scoped memory for tpu_custom_call.1']
    #allocation9 [shape = 'u8[16384]{0}', space=vmem, size = 0x4000, scoped, tag = 'input window, operand 2']
    #allocation10 [shape = 's32[2]{0}', space=sflag, size = 0x8, scoped, tag = 'scoped memory for tpu_custom_call.1']
    #allocation11 [shape = 'u8[65536]{0}', space=vmem, size = 0x10000, scoped, tag = 'input window, operand 4, single buffered']
    #allocation12 [shape = 'u8[65536]{0}', space=vmem, size = 0x10000, scoped, tag = 'input window, operand 5, single buffered']
    #allocation13 [shape = 's32[1]{0}', space=sflag, size = 0x4, scoped, tag = 'scoped memory for tpu_custom_call.1']
    #allocation14 [shape = 'u8[65536]{0}', space=vmem, size = 0x10000, scoped, tag = 'input window, operand 8, single buffered']
    #allocation15 [shape = 'u8[8192]{0}', space=vmem, size = 0x2000, scoped, tag = 'output window, operand 0']
    %21 = vsyncpa [#allocation7], 0
    %s22 = scalar_lea.sflag [#allocation7], 1
    %23 = vsyncpa %s22, 0
    %24 = vsyncpa [#allocation10], 0
    %s25 = scalar_lea.sflag [#allocation10], 1
    %26 = vsyncpa %s25, 0
    %27 = vsyncpa [#allocation13], 0
    %28 = vsyncpa [#allocation8], 0
    %s29 = scalar_lea.sflag [#allocation8], 1
    %30 = vsyncpa %s29, 0
    loop: start=0, step=1, limit=4
    $region2: #{tpu_custom_call.1} parent=1 // loop_pre_header
      _
    $region3: #{tpu_custom_call.1} parent=1 // loop_header
      %s32 = sphi 0, %s36
      %p33 = scmp.ge.s32.totalorder %s32, 4
      %s39 = sphi 0, %s51
      %s40 = sphi 0, %s47
      %s41 = sphi 0, %s39
      %s42 = sphi 0, %s40
      %s43 = sphi 0, %s41
      %s44 = sphi 0, %s42
      %s56 = sphi 0, %s58
      %s59 = sphi 0, %s56
      %s60 = sphi 0, %s59
      %s76 = sphi 0, %s60
      %s84 = sphi 0, %s86
      %s87 = sphi 0, %s84
      %s88 = sphi 0, %s87
      %s104 = sphi 0, %s88
      %s110 = sphi 0, %s112
      %s113 = sphi 0, %s110
      %s114 = sphi 0, %s113
      %s130 = sphi 0, %s114
      %s134 = sphi 0, %s134
      %s136 = sphi 0, %s134
      %s137 = sphi 0, %s136
      %s151 = sphi 0, %s137
      %s155 = sphi 0, %s155
      %s157 = sphi 0, %s155
      %s158 = sphi 0, %s157
      %s172 = sphi 0, %s158
      %s176 = sphi 0, %s176
      %s178 = sphi 0, %s176
      %s179 = sphi 0, %s178
      %s193 = sphi 0, %s179
      %s197 = sphi 0, %s197
      %s199 = sphi 0, %s197
      %s200 = sphi 0, %s199
      %s214 = sphi 0, %s200
      %s218 = sphi 0, %s218
      %s220 = sphi 0, %s218
      %s221 = sphi 0, %s220
      %s235 = sphi 0, %s221
      %s239 = sphi 0, %s239
      %s241 = sphi 0, %s239
      %s242 = sphi 0, %s241
      %s256 = sphi 0, %s242
      %s262 = sphi 0, %s264
      %s265 = sphi 0, %s262
      %s266 = sphi 0, %s265
      %s282 = sphi 0, %s266
    $region4: #{tpu_custom_call.1} parent=1 // loop_header_branch
      %35 = sbr.rel (%p33) target = $region8
    $region5: #{tpu_custom_call.1} parent=1 // loop_body
      %s37 = ssub.s32 %s32, 1
      %s38 = ssub.s32 %s32, 2
      %s45 = sadd.s32 1, %s40
      %p46 = scmp.ge.s32.totalorder %s45, 1
      %s47 = scalar_select %p46, 0, %s45
      %s48 = sadd.s32 1, %s39
      %s49 = scalar_select %p46, %s48, %s39
      %p50 = scmp.ge.s32.totalorder %s49, 2
      %s51 = scalar_select %p50, 0, %s49
      %s52 = ssub.s32 %s39, %s51
      %s53 = ssub.s32 %s40, %s47
      %s54 = sor.u32 %s52, %s53
      %p55 = scmp.eq.s32.totalorder %s54, 0
      %s57 = sadd.s32 %s56, 1
      %s58 = scalar_select %p55, %s56, %s57
      %p61 = pneg %p55
      %p62 = scmp.eq.s32.totalorder %s32, 1
      %p63 = por %p61, %p62
      %p64 = scmp.ne.s32.totalorder %s56, %s59
      %p65 = scmp.eq.s32.totalorder %s32, 0
      %p66 = por %p64, %p65
      %p67 = scmp.ne.s32.totalorder %s56, %s59
      %p68 = scmp.eq.s32.totalorder %s37, 1
      %p69 = por %p67, %p68
      %p70 = scmp.ne.s32.totalorder %s59, %s60
      %p71 = scmp.eq.s32.totalorder %s37, 0
      %p72 = por %p70, %p71
      %p73 = scmp.ne.s32.totalorder %s59, %s60
      %p74 = scmp.eq.s32.totalorder %s38, 1
      %p75 = por %p73, %p74
      %p77 = scmp.ne.s32.totalorder %s60, %s76
      %p78 = scmp.eq.s32.totalorder %s38, 0
      %p79 = por %p77, %p78
      %s80 = ssub.s32 %s39, %s51
      %s81 = ssub.s32 %s40, %s47
      %s82 = sor.u32 %s80, %s81
      %p83 = scmp.eq.s32.totalorder %s82, 0
      %s85 = sadd.s32 %s84, 1
      %s86 = scalar_select %p83, %s84, %s85
      %p89 = pneg %p83
      %p90 = scmp.eq.s32.totalorder %s32, 1
      %p91 = por %p89, %p90
      %p92 = scmp.ne.s32.totalorder %s84, %s87
      %p93 = scmp.eq.s32.totalorder %s32, 0
      %p94 = por %p92, %p93
      %p95 = scmp.ne.s32.totalorder %s84, %s87
      %p96 = scmp.eq.s32.totalorder %s37, 1
      %p97 = por %p95, %p96
      %p98 = scmp.ne.s32.totalorder %s87, %s88
      %p99 = scmp.eq.s32.totalorder %s37, 0
      %p100 = por %p98, %p99
      %p101 = scmp.ne.s32.totalorder %s87, %s88
      %p102 = scmp.eq.s32.totalorder %s38, 1
      %p103 = por %p101, %p102
      %p105 = scmp.ne.s32.totalorder %s88, %s104
      %p106 = scmp.eq.s32.totalorder %s38, 0
      %p107 = por %p105, %p106
      %s108 = ssub.s32 %s39, %s51
      %p109 = scmp.eq.s32.totalorder %s108, 0
      %s111 = sadd.s32 %s110, 1
      %s112 = scalar_select %p109, %s110, %s111
      %p115 = pneg %p109
      %p116 = scmp.eq.s32.totalorder %s32, 1
      %p117 = por %p115, %p116
      %p118 = scmp.ne.s32.totalorder %s110, %s113
      %p119 = scmp.eq.s32.totalorder %s32, 0
      %p120 = por %p118, %p119
      %p121 = scmp.ne.s32.totalorder %s110, %s113
      %p122 = scmp.eq.s32.totalorder %s37, 1
      %p123 = por %p121, %p122
      %p124 = scmp.ne.s32.totalorder %s113, %s114
      %p125 = scmp.eq.s32.totalorder %s37, 0
      %p126 = por %p124, %p125
      %p127 = scmp.ne.s32.totalorder %s113, %s114
      %p128 = scmp.eq.s32.totalorder %s38, 1
      %p129 = por %p127, %p128
      %p131 = scmp.ne.s32.totalorder %s114, %s130
      %p132 = scmp.eq.s32.totalorder %s38, 0
      %p133 = por %p131, %p132
      %s135 = sadd.s32 %s134, 1
      %p138 = scmp.eq.s32.totalorder %s32, 1
      %p139 = scmp.ne.s32.totalorder %s134, %s136
      %p140 = scmp.eq.s32.totalorder %s32, 0
      %p141 = por %p139, %p140
      %p142 = scmp.ne.s32.totalorder %s134, %s136
      %p143 = scmp.eq.s32.totalorder %s37, 1
      %p144 = por %p142, %p143
      %p145 = scmp.ne.s32.totalorder %s136, %s137
      %p146 = scmp.eq.s32.totalorder %s37, 0
      %p147 = por %p145, %p146
      %p148 = scmp.ne.s32.totalorder %s136, %s137
      %p149 = scmp.eq.s32.totalorder %s38, 1
      %p150 = por %p148, %p149
      %p152 = scmp.ne.s32.totalorder %s137, %s151
      %p153 = scmp.eq.s32.totalorder %s38, 0
      %p154 = por %p152, %p153
      %s156 = sadd.s32 %s155, 1
      %p159 = scmp.eq.s32.totalorder %s32, 1
      %p160 = scmp.ne.s32.totalorder %s155, %s157
      %p161 = scmp.eq.s32.totalorder %s32, 0
      %p162 = por %p160, %p161
      %p163 = scmp.ne.s32.totalorder %s155, %s157
      %p164 = scmp.eq.s32.totalorder %s37, 1
      %p165 = por %p163, %p164
      %p166 = scmp.ne.s32.totalorder %s157, %s158
      %p167 = scmp.eq.s32.totalorder %s37, 0
      %p168 = por %p166, %p167
      %p169 = scmp.ne.s32.totalorder %s157, %s158
      %p170 = scmp.eq.s32.totalorder %s38, 1
      %p171 = por %p169, %p170
      %p173 = scmp.ne.s32.totalorder %s158, %s172
      %p174 = scmp.eq.s32.totalorder %s38, 0
      %p175 = por %p173, %p174
      %s177 = sadd.s32 %s176, 1
      %p180 = scmp.eq.s32.totalorder %s32, 1
      %p181 = scmp.ne.s32.totalorder %s176, %s178
      %p182 = scmp.eq.s32.totalorder %s32, 0
      %p183 = por %p181, %p182
      %p184 = scmp.ne.s32.totalorder %s176, %s178
      %p185 = scmp.eq.s32.totalorder %s37, 1
      %p186 = por %p184, %p185
      %p187 = scmp.ne.s32.totalorder %s178, %s179
      %p188 = scmp.eq.s32.totalorder %s37, 0
      %p189 = por %p187, %p188
      %p190 = scmp.ne.s32.totalorder %s178, %s179
      %p191 = scmp.eq.s32.totalorder %s38, 1
      %p192 = por %p190, %p191
      %p194 = scmp.ne.s32.totalorder %s179, %s193
      %p195 = scmp.eq.s32.totalorder %s38, 0
      %p196 = por %p194, %p195
      %s198 = sadd.s32 %s197, 1
      %p201 = scmp.eq.s32.totalorder %s32, 1
      %p202 = scmp.ne.s32.totalorder %s197, %s199
      %p203 = scmp.eq.s32.totalorder %s32, 0
      %p204 = por %p202, %p203
      %p205 = scmp.ne.s32.totalorder %s197, %s199
      %p206 = scmp.eq.s32.totalorder %s37, 1
      %p207 = por %p205, %p206
      %p208 = scmp.ne.s32.totalorder %s199, %s200
      %p209 = scmp.eq.s32.totalorder %s37, 0
      %p210 = por %p208, %p209
      %p211 = scmp.ne.s32.totalorder %s199, %s200
      %p212 = scmp.eq.s32.totalorder %s38, 1
      %p213 = por %p211, %p212
      %p215 = scmp.ne.s32.totalorder %s200, %s214
      %p216 = scmp.eq.s32.totalorder %s38, 0
      %p217 = por %p215, %p216
      %s219 = sadd.s32 %s218, 1
      %p222 = scmp.eq.s32.totalorder %s32, 1
      %p223 = scmp.ne.s32.totalorder %s218, %s220
      %p224 = scmp.eq.s32.totalorder %s32, 0
      %p225 = por %p223, %p224
      %p226 = scmp.ne.s32.totalorder %s218, %s220
      %p227 = scmp.eq.s32.totalorder %s37, 1
      %p228 = por %p226, %p227
      %p229 = scmp.ne.s32.totalorder %s220, %s221
      %p230 = scmp.eq.s32.totalorder %s37, 0
      %p231 = por %p229, %p230
      %p232 = scmp.ne.s32.totalorder %s220, %s221
      %p233 = scmp.eq.s32.totalorder %s38, 1
      %p234 = por %p232, %p233
      %p236 = scmp.ne.s32.totalorder %s221, %s235
      %p237 = scmp.eq.s32.totalorder %s38, 0
      %p238 = por %p236, %p237
      %s240 = sadd.s32 %s239, 1
      %p243 = scmp.eq.s32.totalorder %s32, 1
      %p244 = scmp.ne.s32.totalorder %s239, %s241
      %p245 = scmp.eq.s32.totalorder %s32, 0
      %p246 = por %p244, %p245
      %p247 = scmp.ne.s32.totalorder %s239, %s241
      %p248 = scmp.eq.s32.totalorder %s37, 1
      %p249 = por %p247, %p248
      %p250 = scmp.ne.s32.totalorder %s241, %s242
      %p251 = scmp.eq.s32.totalorder %s37, 0
      %p252 = por %p250, %p251
      %p253 = scmp.ne.s32.totalorder %s241, %s242
      %p254 = scmp.eq.s32.totalorder %s38, 1
      %p255 = por %p253, %p254
      %p257 = scmp.ne.s32.totalorder %s242, %s256
      %p258 = scmp.eq.s32.totalorder %s38, 0
      %p259 = por %p257, %p258
      %s260 = ssub.s32 %s39, %s51
      %p261 = scmp.eq.s32.totalorder %s260, 0
      %s263 = sadd.s32 %s262, 1
      %s264 = scalar_select %p261, %s262, %s263
      %p267 = pneg %p261
      %p268 = scmp.eq.s32.totalorder %s32, 1
      %p269 = por %p267, %p268
      %p270 = scmp.ne.s32.totalorder %s262, %s265
      %p271 = scmp.eq.s32.totalorder %s32, 0
      %p272 = por %p270, %p271
      %p273 = scmp.ne.s32.totalorder %s262, %s265
      %p274 = scmp.eq.s32.totalorder %s37, 1
      %p275 = por %p273, %p274
      %p276 = scmp.ne.s32.totalorder %s265, %s266
      %p277 = scmp.eq.s32.totalorder %s37, 0
      %p278 = por %p276, %p277
      %p279 = scmp.ne.s32.totalorder %s265, %s266
      %p280 = scmp.eq.s32.totalorder %s38, 1
      %p281 = por %p279, %p280
      %p283 = scmp.ne.s32.totalorder %s266, %s282
      %p284 = scmp.eq.s32.totalorder %s38, 0
      %p285 = por %p283, %p284
      %p286 = scmp.le.s32.totalorder 1, %s32
      %p287 = scmp.lt.s32.totalorder %s32, 3
      %p288 = pnand %p286, %p287
      %p289 = pneg %p288
      // Predicated region
      $region9: #{tpu_custom_call.1} parent=5 // pred_check
        _
      $region10: #{tpu_custom_call.1} parent=5 // pred_check_branch
        %291 = sbr.rel (%p288) target = $region12
      $region11: #{tpu_custom_call.1} parent=5 // pred_region
        %s292 = ssub.s32 %s32, 1
        // Predicated region
        $region13: #{tpu_custom_call.1} parent=11 // pred_check
          %p293 = pneg %p147
        $region14: #{tpu_custom_call.1} parent=11 // pred_check_branch
          %295 = sbr.rel (%p293) target = $region16
        $region15: #{tpu_custom_call.1} parent=11 // pred_region
          %s297 = ssub.s32 2048, 2048
          %298 = vsyncadd [#allocation10], %s297
          %s299 = sshll.u32 [#allocation11], 4
          %s300 = int_to_ptr.vmem [resolvable:$true] %s299
          %305 = dma.hbm_to_vmem [thread:$0]  %s4, 2048, %s300, [#allocation10], 128, 128, 8
        $region16: #{tpu_custom_call.1} parent=11 // pred_fallthru
          _
        // Predicated region
        $region17: #{tpu_custom_call.1} parent=11 // pred_check
          %p306 = pneg %p168
        $region18: #{tpu_custom_call.1} parent=11 // pred_check_branch
          %308 = sbr.rel (%p306) target = $region20
        $region19: #{tpu_custom_call.1} parent=11 // pred_region
          %s310 = ssub.s32 2048, 2048
          %311 = vsyncadd [#allocation13], %s310
          %s312 = sshll.u32 [#allocation12], 4
          %s313 = int_to_ptr.vmem [resolvable:$true] %s312
          %318 = dma.hbm_to_vmem [thread:$0]  %s5, 2048, %s313, [#allocation13], 128, 128, 8
        $region20: #{tpu_custom_call.1} parent=11 // pred_fallthru
          _
        // Predicated region
        $region21: #{tpu_custom_call.1} parent=11 // pred_check
          %p319 = pneg %p189
        $region22: #{tpu_custom_call.1} parent=11 // pred_check_branch
          %321 = sbr.rel (%p319) target = $region24
        $region23: #{tpu_custom_call.1} parent=11 // pred_region
          _
        $region24: #{tpu_custom_call.1} parent=11 // pred_fallthru
          _
        // Predicated region
        $region25: #{tpu_custom_call.1} parent=11 // pred_check
          %p322 = pneg %p210
        $region26: #{tpu_custom_call.1} parent=11 // pred_check_branch
          %324 = sbr.rel (%p322) target = $region28
        $region27: #{tpu_custom_call.1} parent=11 // pred_region
          _
        $region28: #{tpu_custom_call.1} parent=11 // pred_fallthru
          _
        // Predicated region
        $region29: #{tpu_custom_call.1} parent=11 // pred_check
          %p325 = pneg %p231
        $region30: #{tpu_custom_call.1} parent=11 // pred_check_branch
          %327 = sbr.rel (%p325) target = $region32
        $region31: #{tpu_custom_call.1} parent=11 // pred_region
          %s329 = ssub.s32 2048, 2048
          %330 = vsyncadd [#allocation13], %s329
          %s331 = sshll.u32 [#allocation14], 4
          %s332 = int_to_ptr.vmem [resolvable:$true] %s331
          %337 = dma.hbm_to_vmem [thread:$0]  %s8, 2048, %s332, [#allocation13], 128, 128, 8
        $region32: #{tpu_custom_call.1} parent=11 // pred_fallthru
          _
        // Predicated region
        $region33: #{tpu_custom_call.1} parent=11 // pred_check
          %p338 = pneg %p252
        $region34: #{tpu_custom_call.1} parent=11 // pred_check_branch
          %340 = sbr.rel (%p338) target = $region36
        $region35: #{tpu_custom_call.1} parent=11 // pred_region
          _
        $region36: #{tpu_custom_call.1} parent=11 // pred_fallthru
          _
      $region12: #{tpu_custom_call.1} parent=5 // pred_fallthru
        _
      %p341 = scmp.lt.s32.totalorder %s32, 2
      // Predicated region
      $region37: #{tpu_custom_call.1} parent=5 // pred_check
        %p342 = pneg %p341
      $region38: #{tpu_custom_call.1} parent=5 // pred_check_branch
        %344 = sbr.rel (%p342) target = $region40
      $region39: #{tpu_custom_call.1} parent=5 // pred_region
        // Predicated region
        $region41: #{tpu_custom_call.1} parent=39 // pred_check
          %p345 = pneg %p66
        $region42: #{tpu_custom_call.1} parent=39 // pred_check_branch
          %347 = sbr.rel (%p345) target = $region44
        $region43: #{tpu_custom_call.1} parent=39 // pred_region
          %s348 = sand.u32 %s56, 1
          %s349 = scalar_lea.sflag [#allocation7], %s348
          %s350 = sand.u32 %s56, 1
          %s351 = smul.addr %s350, 16
          %s352 = scalar_lea.vmem [#allocation6], %s351
          %s353 = smul.u32 2, %s40
          %s355 = ssub.s32 256, 256
          %356 = vsyncadd %s349, %s355
          %s357 = smul.addr %s39, 2
          %s358 = sadd.s32 %s353, %s357
          %s359 = smul.addr %s358, 128
          %s360 = scalar_lea.hbm %s1, %s359
          %s362 = sshll.u32 %s352, 4
          %s363 = int_to_ptr.vmem [resolvable:$true] %s362
          %365 = dma.hbm_to_vmem [thread:$0]  %s360, 256, %s363, %s349
        $region44: #{tpu_custom_call.1} parent=39 // pred_fallthru
          _
        // Predicated region
        $region45: #{tpu_custom_call.1} parent=39 // pred_check
          %p366 = pneg %p94
        $region46: #{tpu_custom_call.1} parent=39 // pred_check_branch
          %368 = sbr.rel (%p366) target = $region48
        $region47: #{tpu_custom_call.1} parent=39 // pred_region
          %s369 = sand.u32 %s32, 1
          %s370 = scalar_lea.sflag [#allocation10], %s369
          %s371 = sand.u32 %s84, 1
          %s372 = smul.addr %s371, 16
          %s373 = scalar_lea.vmem [#allocation9], %s372
          %s374 = smul.u32 2, %s40
          %s376 = ssub.s32 256, 256
          %377 = vsyncadd %s370, %s376
          %s378 = smul.addr %s39, 2
          %s379 = sadd.s32 %s374, %s378
          %s380 = smul.addr %s379, 128
          %s381 = scalar_lea.hbm %s2, %s380
          %s383 = sshll.u32 %s373, 4
          %s384 = int_to_ptr.vmem [resolvable:$true] %s383
          %386 = dma.hbm_to_vmem [thread:$0]  %s381, 256, %s384, %s370
        $region48: #{tpu_custom_call.1} parent=39 // pred_fallthru
          _
        // Predicated region
        $region49: #{tpu_custom_call.1} parent=39 // pred_check
          %p387 = pneg %p120
        $region50: #{tpu_custom_call.1} parent=39 // pred_check_branch
          %389 = sbr.rel (%p387) target = $region52
        $region51: #{tpu_custom_call.1} parent=39 // pred_region
          %p390 = scmp.lt.s32.totalorder %s39, 1
          %s391 = scalar_select %p390, %s39, 1
          %s392 = smul.addr %s391, 8
          %s393 = scalar_lea.vmem %s3, %s392
        $region52: #{tpu_custom_call.1} parent=39 // pred_fallthru
          _
      $region40: #{tpu_custom_call.1} parent=5 // pred_fallthru
        _
      %p394 = scmp.le.s32.totalorder 1, %s32
      %p395 = scmp.lt.s32.totalorder %s32, 3
      %p396 = pnand %p394, %p395
      %p397 = pneg %p396
      // Predicated region
      $region53: #{tpu_custom_call.1} parent=5 // pred_check
        _
      $region54: #{tpu_custom_call.1} parent=5 // pred_check_branch
        %399 = sbr.rel (%p396) target = $region56
      $region55: #{tpu_custom_call.1} parent=5 // pred_region
        %s400 = ssub.s32 %s32, 1
        %s401 = sand.u32 %s59, 1
        %s402 = scalar_lea.sflag [#allocation7], %s401
        %s403 = sand.u32 %s59, 1
        %s404 = smul.addr %s403, 16
        %s405 = scalar_lea.vmem [#allocation6], %s404
        // Predicated region
        $region57: #{tpu_custom_call.1} parent=55 // pred_check
          %p406 = pneg %p72
        $region58: #{tpu_custom_call.1} parent=55 // pred_check_branch
          %408 = sbr.rel (%p406) target = $region60
        $region59: #{tpu_custom_call.1} parent=55 // pred_region
          %409 = dma.done %s402, 256
        $region60: #{tpu_custom_call.1} parent=55 // pred_fallthru
          _
        %s410 = sand.u32 %s37, 1
        %s411 = scalar_lea.sflag [#allocation10], %s410
        %s412 = sand.u32 %s87, 1
        %s413 = smul.addr %s412, 16
        %s414 = scalar_lea.vmem [#allocation9], %s413
        // Predicated region
        $region61: #{tpu_custom_call.1} parent=55 // pred_check
          %p415 = pneg %p100
        $region62: #{tpu_custom_call.1} parent=55 // pred_check_branch
          %417 = sbr.rel (%p415) target = $region64
        $region63: #{tpu_custom_call.1} parent=55 // pred_region
          %418 = dma.done %s411, 256
        $region64: #{tpu_custom_call.1} parent=55 // pred_fallthru
          _
        // Predicated region
        $region65: #{tpu_custom_call.1} parent=55 // pred_check
          %p419 = pneg %p147
        $region66: #{tpu_custom_call.1} parent=55 // pred_check_branch
          %421 = sbr.rel (%p419) target = $region68
        $region67: #{tpu_custom_call.1} parent=55 // pred_region
          %422 = dma.done [#allocation10], 2048
        $region68: #{tpu_custom_call.1} parent=55 // pred_fallthru
          _
        // Predicated region
        $region69: #{tpu_custom_call.1} parent=55 // pred_check
          %p423 = pneg %p168
        $region70: #{tpu_custom_call.1} parent=55 // pred_check_branch
          %425 = sbr.rel (%p423) target = $region72
        $region71: #{tpu_custom_call.1} parent=55 // pred_region
          %426 = dma.done [#allocation13], 2048
        $region72: #{tpu_custom_call.1} parent=55 // pred_fallthru
          _
        // Predicated region
        $region73: #{tpu_custom_call.1} parent=55 // pred_check
          %p427 = pneg %p231
        $region74: #{tpu_custom_call.1} parent=55 // pred_check_branch
          %429 = sbr.rel (%p427) target = $region76
        $region75: #{tpu_custom_call.1} parent=55 // pred_region
          %430 = dma.done [#allocation13], 2048
        $region76: #{tpu_custom_call.1} parent=55 // pred_fallthru
          _
        %s431 = sand.u32 %s59, 1
        %s432 = scalar_lea.sflag [#allocation7], %s431
        %s433 = sand.u32 %s59, 1
        %s434 = smul.addr %s433, 16
        %s435 = scalar_lea.vmem [#allocation6], %s434
        %p436 = pneg %p72
        %p437 = pneg %p69
        %s438 = sand.u32 %s37, 1
        %s439 = scalar_lea.sflag [#allocation10], %s438
        %s440 = sand.u32 %s87, 1
        %s441 = smul.addr %s440, 16
        %s442 = scalar_lea.vmem [#allocation9], %s441
        %p443 = pneg %p100
        %p444 = pneg %p97
        %p445 = scmp.lt.s32.totalorder %s41, 1
        %s446 = scalar_select %p445, %s41, 1
        %s447 = smul.addr %s446, 8
        %s448 = scalar_lea.vmem %s3, %s447
        %p449 = pneg %p126
        %p450 = pneg %p123
        %p451 = pneg %p147
        %p452 = pneg %p144
        %p453 = pneg %p168
        %p454 = pneg %p165
        %p455 = pneg %p189
        %p456 = pneg %p186
        %p457 = pneg %p210
        %p458 = pneg %p207
        %p459 = pneg %p231
        %p460 = pneg %p228
        %p461 = pneg %p252
        %p462 = pneg %p249
        %p463 = pneg %p278
        %p464 = pneg %p275
        %s465 = sand.u32 %s265, 1
        %s466 = scalar_lea.sflag [#allocation8], %s465
        %s467 = sand.u32 %s265, 1
        %s468 = smul.addr %s467, 8
        %s469 = scalar_lea.vmem [#allocation15], %s468
        %s470 = smul.u32 2, %s42
        %s471 = smul.u32 2, %s42
        %p472 = scmp.lt.s32.totalorder %s41, 1
        %s473 = scalar_select %p472, %s41, 1
        %s474 = smul.addr %s473, 8
        %s475 = scalar_lea.vmem %s3, %s474
        %p476 = scmp.eq.s32.totalorder %s42, 0
        // Predicated region
        $region77: #{tpu_custom_call.1} parent=55 // pred_check
          %p477 = pneg %p476
        $region78: #{tpu_custom_call.1} parent=55 // pred_check_branch
          %479 = sbr.rel (%p477) target = $region80
        $region79: #{tpu_custom_call.1} parent=55 // pred_region
          %480 = vst [vmem:[#allocation2] sm:$0xff] 0
          %vm481 = vcmask 7168
          %482 = vst.msk [vmem:[#allocation3] sm:$0xff] %vm481, 0
        $region80: #{tpu_custom_call.1} parent=55 // pred_fallthru
          _
        %s483 = smul.u32 %s42, 256
        %s484 = sld [smem:[#allocation5 + %s41]]
        %p485 = scmp.lt.s32.totalorder %s483, %s484
        // Predicated region
        $region81: #{tpu_custom_call.1} parent=55 // pred_check
          %p486 = pneg %p485
        $region82: #{tpu_custom_call.1} parent=55 // pred_check_branch
          %488 = sbr.rel (%p486) target = $region84
        $region83: #{tpu_custom_call.1} parent=55 // pred_region
          %v489 = vld [vmem:[%s475] sm:$0xff]
          %v490 = vlaneseq
          %v491 = vand.u32 %v490, 127
          %v492 = vadd.s32 %v491, 128
          %v493 = vstv %s483
          %v494 = vadd.s32 %v493, %v491
          %v495 = vadd.s32 %v493, %v492
          %496 = vset.pattern.permute.xlu0 0
          %497 = vperm.xlu0 %496, %v489
          %v498 = vpop.permute.xlu0 %497
          %vm499 = vcmp.lt.s32.totalorder %v494, %v498
          %vm500 = vcmp.lt.s32.totalorder %v495, %v498
          %v501 = vld [vmem:[%s405] sm:$0xff]
          %v502 = vld [vmem:[%s405 + $0x8] sm:$0xff]
          %v503 = vsel %vm499, %v501, 64
          %v504 = vsel %vm500, %v502, 64
          %v505 = vld [vmem:[#allocation2] sm:$0xff]
          %v506 = vlaneseq
          %v507 = vshrl.u32 %v506, 7
          %v508 = vsub.s32 0, %v507
          %v509 = vrot.slane %v503, %v508
          %511 = vbcast.lane.b32.xlu0 %v509, 256
          %v512 = vpop.permute.xlu0 %511
          %s514 = sor.u32 256, 8
          %515 = vbcast.lane.b32.xlu0 %v509, %s514
          %v516 = vpop.permute.xlu0 %515
          %s518 = sor.u32 256, 16
          %519 = vbcast.lane.b32.xlu0 %v509, %s518
          %v520 = vpop.permute.xlu0 %519
          %s522 = sor.u32 256, 24
          %523 = vbcast.lane.b32.xlu0 %v509, %s522
          %v524 = vpop.permute.xlu0 %523
          %s526 = sor.u32 256, 32
          %527 = vbcast.lane.b32.xlu0 %v509, %s526
          %v528 = vpop.permute.xlu0 %527
          %s530 = sor.u32 256, 40
          %531 = vbcast.lane.b32.xlu0 %v509, %s530
          %v532 = vpop.permute.xlu0 %531
          %s534 = sor.u32 256, 48
          %535 = vbcast.lane.b32.xlu0 %v509, %s534
          %v536 = vpop.permute.xlu0 %535
          %s538 = sor.u32 256, 56
          %539 = vbcast.lane.b32.xlu0 %v509, %s538
          %v540 = vpop.permute.xlu0 %539
          %s542 = sor.u32 256, 64
          %543 = vbcast.lane.b32.xlu0 %v509, %s542
          %v544 = vpop.permute.xlu0 %543
          %s546 = sor.u32 256, 72
          %547 = vbcast.lane.b32.xlu0 %v509, %s546
          %v548 = vpop.permute.xlu0 %547
          %s550 = sor.u32 256, 80
          %551 = vbcast.lane.b32.xlu0 %v509, %s550
          %v552 = vpop.permute.xlu0 %551
          %s554 = sor.u32 256, 88
          %555 = vbcast.lane.b32.xlu0 %v509, %s554
          %v556 = vpop.permute.xlu0 %555
          %s558 = sor.u32 256, 96
          %559 = vbcast.lane.b32.xlu0 %v509, %s558
          %v560 = vpop.permute.xlu0 %559
          %s562 = sor.u32 256, 104
          %563 = vbcast.lane.b32.xlu0 %v509, %s562
          %v564 = vpop.permute.xlu0 %563
          %s566 = sor.u32 256, 112
          %567 = vbcast.lane.b32.xlu0 %v509, %s566
          %v568 = vpop.permute.xlu0 %567
          %s570 = sor.u32 256, 120
          %571 = vbcast.lane.b32.xlu0 %v509, %s570
          %v572 = vpop.permute.xlu0 %571
          %v573 = vlaneseq
          %v574 = vshrl.u32 %v573, 7
          %v575 = vsub.s32 0, %v574
          %v576 = vrot.slane %v504, %v575
          %578 = vbcast.lane.b32.xlu0 %v576, 256
          %v579 = vpop.permute.xlu0 %578
          %s581 = sor.u32 256, 8
          %582 = vbcast.lane.b32.xlu0 %v576, %s581
          %v583 = vpop.permute.xlu0 %582
          %s585 = sor.u32 256, 16
          %586 = vbcast.lane.b32.xlu0 %v576, %s585
          %v587 = vpop.permute.xlu0 %586
          %s589 = sor.u32 256, 24
          %590 = vbcast.lane.b32.xlu0 %v576, %s589
          %v591 = vpop.permute.xlu0 %590
          %s593 = sor.u32 256, 32
          %594 = vbcast.lane.b32.xlu0 %v576, %s593
          %v595 = vpop.permute.xlu0 %594
          %s597 = sor.u32 256, 40
          %598 = vbcast.lane.b32.xlu0 %v576, %s597
          %v599 = vpop.permute.xlu0 %598
          %s601 = sor.u32 256, 48
          %602 = vbcast.lane.b32.xlu0 %v576, %s601
          %v603 = vpop.permute.xlu0 %602
          %s605 = sor.u32 256, 56
          %606 = vbcast.lane.b32.xlu0 %v576, %s605
          %v607 = vpop.permute.xlu0 %606
          %s609 = sor.u32 256, 64
          %610 = vbcast.lane.b32.xlu0 %v576, %s609
          %v611 = vpop.permute.xlu0 %610
          %s613 = sor.u32 256, 72
          %614 = vbcast.lane.b32.xlu0 %v576, %s613
          %v615 = vpop.permute.xlu0 %614
          %s617 = sor.u32 256, 80
          %618 = vbcast.lane.b32.xlu0 %v576, %s617
          %v619 = vpop.permute.xlu0 %618
          %s621 = sor.u32 256, 88
          %622 = vbcast.lane.b32.xlu0 %v576, %s621
          %v623 = vpop.permute.xlu0 %622
          %s625 = sor.u32 256, 96
          %626 = vbcast.lane.b32.xlu0 %v576, %s625
          %v627 = vpop.permute.xlu0 %626
          %s629 = sor.u32 256, 104
          %630 = vbcast.lane.b32.xlu0 %v576, %s629
          %v631 = vpop.permute.xlu0 %630
          %s633 = sor.u32 256, 112
          %634 = vbcast.lane.b32.xlu0 %v576, %s633
          %v635 = vpop.permute.xlu0 %634
          %s637 = sor.u32 256, 120
          %638 = vbcast.lane.b32.xlu0 %v576, %s637
          %v639 = vpop.permute.xlu0 %638
          %v640 = vlaneseq
          %v641 = vshrl.u32 %v640, 7
          %v642 = vsub.s32 1, %v641
          %v643 = vrot.slane %v503, %v642
          %645 = vbcast.lane.b32.xlu0 %v643, 256
          %v646 = vpop.permute.xlu0 %645
          %s648 = sor.u32 256, 8
          %649 = vbcast.lane.b32.xlu0 %v643, %s648
          %v650 = vpop.permute.xlu0 %649
          %s652 = sor.u32 256, 16
          %653 = vbcast.lane.b32.xlu0 %v643, %s652
          %v654 = vpop.permute.xlu0 %653
          %s656 = sor.u32 256, 24
          %657 = vbcast.lane.b32.xlu0 %v643, %s656
          %v658 = vpop.permute.xlu0 %657
          %s660 = sor.u32 256, 32
          %661 = vbcast.lane.b32.xlu0 %v643, %s660
          %v662 = vpop.permute.xlu0 %661
          %s664 = sor.u32 256, 40
          %665 = vbcast.lane.b32.xlu0 %v643, %s664
          %v666 = vpop.permute.xlu0 %665
          %s668 = sor.u32 256, 48
          %669 = vbcast.lane.b32.xlu0 %v643, %s668
          %v670 = vpop.permute.xlu0 %669
          %s672 = sor.u32 256, 56
          %673 = vbcast.lane.b32.xlu0 %v643, %s672
          %v674 = vpop.permute.xlu0 %673
          %s676 = sor.u32 256, 64
          %677 = vbcast.lane.b32.xlu0 %v643, %s676
          %v678 = vpop.permute.xlu0 %677
          %s680 = sor.u32 256, 72
          %681 = vbcast.lane.b32.xlu0 %v643, %s680
          %v682 = vpop.permute.xlu0 %681
          %s684 = sor.u32 256, 80
          %685 = vbcast.lane.b32.xlu0 %v643, %s684
          %v686 = vpop.permute.xlu0 %685
          %s688 = sor.u32 256, 88
          %689 = vbcast.lane.b32.xlu0 %v643, %s688
          %v690 = vpop.permute.xlu0 %689
          %s692 = sor.u32 256, 96
          %693 = vbcast.lane.b32.xlu0 %v643, %s692
          %v694 = vpop.permute.xlu0 %693
          %s696 = sor.u32 256, 104
          %697 = vbcast.lane.b32.xlu0 %v643, %s696
          %v698 = vpop.permute.xlu0 %697
          %s700 = sor.u32 256, 112
          %701 = vbcast.lane.b32.xlu0 %v643, %s700
          %v702 = vpop.permute.xlu0 %701
          %s704 = sor.u32 256, 120
          %705 = vbcast.lane.b32.xlu0 %v643, %s704
          %v706 = vpop.permute.xlu0 %705
          %v707 = vlaneseq
          %v708 = vshrl.u32 %v707, 7
          %v709 = vsub.s32 1, %v708
          %v710 = vrot.slane %v504, %v709
          %712 = vbcast.lane.b32.xlu0 %v710, 256
          %v713 = vpop.permute.xlu0 %712
          %s715 = sor.u32 256, 8
          %716 = vbcast.lane.b32.xlu0 %v710, %s715
          %v717 = vpop.permute.xlu0 %716
          %s719 = sor.u32 256, 16
          %720 = vbcast.lane.b32.xlu0 %v710, %s719
          %v721 = vpop.permute.xlu0 %720
          %s723 = sor.u32 256, 24
          %724 = vbcast.lane.b32.xlu0 %v710, %s723
          %v725 = vpop.permute.xlu0 %724
          %s727 = sor.u32 256, 32
          %728 = vbcast.lane.b32.xlu0 %v710, %s727
          %v729 = vpop.permute.xlu0 %728
          %s731 = sor.u32 256, 40
          %732 = vbcast.lane.b32.xlu0 %v710, %s731
          %v733 = vpop.permute.xlu0 %732
          %s735 = sor.u32 256, 48
          %736 = vbcast.lane.b32.xlu0 %v710, %s735
          %v737 = vpop.permute.xlu0 %736
          %s739 = sor.u32 256, 56
          %740 = vbcast.lane.b32.xlu0 %v710, %s739
          %v741 = vpop.permute.xlu0 %740
          %s743 = sor.u32 256, 64
          %744 = vbcast.lane.b32.xlu0 %v710, %s743
          %v745 = vpop.permute.xlu0 %744
          %s747 = sor.u32 256, 72
          %748 = vbcast.lane.b32.xlu0 %v710, %s747
          %v749 = vpop.permute.xlu0 %748
          %s751 = sor.u32 256, 80
          %752 = vbcast.lane.b32.xlu0 %v710, %s751
          %v753 = vpop.permute.xlu0 %752
          %s755 = sor.u32 256, 88
          %756 = vbcast.lane.b32.xlu0 %v710, %s755
          %v757 = vpop.permute.xlu0 %756
          %s759 = sor.u32 256, 96
          %760 = vbcast.lane.b32.xlu0 %v710, %s759
          %v761 = vpop.permute.xlu0 %760
          %s763 = sor.u32 256, 104
          %764 = vbcast.lane.b32.xlu0 %v710, %s763
          %v765 = vpop.permute.xlu0 %764
          %s767 = sor.u32 256, 112
          %768 = vbcast.lane.b32.xlu0 %v710, %s767
          %v769 = vpop.permute.xlu0 %768
          %s771 = sor.u32 256, 120
          %772 = vbcast.lane.b32.xlu0 %v710, %s771
          %v773 = vpop.permute.xlu0 %772
          %v774 = vlaneseq
          %v775 = vshrl.u32 %v774, 7
          %v776 = vsub.s32 2, %v775
          %v777 = vrot.slane %v503, %v776
          %779 = vbcast.lane.b32.xlu0 %v777, 256
          %v780 = vpop.permute.xlu0 %779
          %s782 = sor.u32 256, 8
          %783 = vbcast.lane.b32.xlu0 %v777, %s782
          %v784 = vpop.permute.xlu0 %783
          %s786 = sor.u32 256, 16
          %787 = vbcast.lane.b32.xlu0 %v777, %s786
          %v788 = vpop.permute.xlu0 %787
          %s790 = sor.u32 256, 24
          %791 = vbcast.lane.b32.xlu0 %v777, %s790
          %v792 = vpop.permute.xlu0 %791
          %s794 = sor.u32 256, 32
          %795 = vbcast.lane.b32.xlu0 %v777, %s794
          %v796 = vpop.permute.xlu0 %795
          %s798 = sor.u32 256, 40
          %799 = vbcast.lane.b32.xlu0 %v777, %s798
          %v800 = vpop.permute.xlu0 %799
          %s802 = sor.u32 256, 48
          %803 = vbcast.lane.b32.xlu0 %v777, %s802
          %v804 = vpop.permute.xlu0 %803
          %s806 = sor.u32 256, 56
          %807 = vbcast.lane.b32.xlu0 %v777, %s806
          %v808 = vpop.permute.xlu0 %807
          %s810 = sor.u32 256, 64
          %811 = vbcast.lane.b32.xlu0 %v777, %s810
          %v812 = vpop.permute.xlu0 %811
          %s814 = sor.u32 256, 72
          %815 = vbcast.lane.b32.xlu0 %v777, %s814
          %v816 = vpop.permute.xlu0 %815
          %s818 = sor.u32 256, 80
          %819 = vbcast.lane.b32.xlu0 %v777, %s818
          %v820 = vpop.permute.xlu0 %819
          %s822 = sor.u32 256, 88
          %823 = vbcast.lane.b32.xlu0 %v777, %s822
          %v824 = vpop.permute.xlu0 %823
          %s826 = sor.u32 256, 96
          %827 = vbcast.lane.b32.xlu0 %v777, %s826
          %v828 = vpop.permute.xlu0 %827
          %s830 = sor.u32 256, 104
          %831 = vbcast.lane.b32.xlu0 %v777, %s830
          %v832 = vpop.permute.xlu0 %831
          %s834 = sor.u32 256, 112
          %835 = vbcast.lane.b32.xlu0 %v777, %s834
          %v836 = vpop.permute.xlu0 %835
          %s838 = sor.u32 256, 120
          %839 = vbcast.lane.b32.xlu0 %v777, %s838
          %v840 = vpop.permute.xlu0 %839
          %v841 = vlaneseq
          %v842 = vshrl.u32 %v841, 7
          %v843 = vsub.s32 2, %v842
          %v844 = vrot.slane %v504, %v843
          %846 = vbcast.lane.b32.xlu0 %v844, 256
          %v847 = vpop.permute.xlu0 %846
          %s849 = sor.u32 256, 8
          %850 = vbcast.lane.b32.xlu0 %v844, %s849
          %v851 = vpop.permute.xlu0 %850
          %s853 = sor.u32 256, 16
          %854 = vbcast.lane.b32.xlu0 %v844, %s853
          %v855 = vpop.permute.xlu0 %854
          %s857 = sor.u32 256, 24
          %858 = vbcast.lane.b32.xlu0 %v844, %s857
          %v859 = vpop.permute.xlu0 %858
          %s861 = sor.u32 256, 32
          %862 = vbcast.lane.b32.xlu0 %v844, %s861
          %v863 = vpop.permute.xlu0 %862
          %s865 = sor.u32 256, 40
          %866 = vbcast.lane.b32.xlu0 %v844, %s865
          %v867 = vpop.permute.xlu0 %866
          %s869 = sor.u32 256, 48
          %870 = vbcast.lane.b32.xlu0 %v844, %s869
          %v871 = vpop.permute.xlu0 %870
          %s873 = sor.u32 256, 56
          %874 = vbcast.lane.b32.xlu0 %v844, %s873
          %v875 = vpop.permute.xlu0 %874
          %s877 = sor.u32 256, 64
          %878 = vbcast.lane.b32.xlu0 %v844, %s877
          %v879 = vpop.permute.xlu0 %878
          %s881 = sor.u32 256, 72
          %882 = vbcast.lane.b32.xlu0 %v844, %s881
          %v883 = vpop.permute.xlu0 %882
          %s885 = sor.u32 256, 80
          %886 = vbcast.lane.b32.xlu0 %v844, %s885
          %v887 = vpop.permute.xlu0 %886
          %s889 = sor.u32 256, 88
          %890 = vbcast.lane.b32.xlu0 %v844, %s889
          %v891 = vpop.permute.xlu0 %890
          %s893 = sor.u32 256, 96
          %894 = vbcast.lane.b32.xlu0 %v844, %s893
          %v895 = vpop.permute.xlu0 %894
          %s897 = sor.u32 256, 104
          %898 = vbcast.lane.b32.xlu0 %v844, %s897
          %v899 = vpop.permute.xlu0 %898
          %s901 = sor.u32 256, 112
          %902 = vbcast.lane.b32.xlu0 %v844, %s901
          %v903 = vpop.permute.xlu0 %902
          %s905 = sor.u32 256, 120
          %906 = vbcast.lane.b32.xlu0 %v844, %s905
          %v907 = vpop.permute.xlu0 %906
          %v908 = vlaneseq
          %v909 = vshrl.u32 %v908, 7
          %v910 = vsub.s32 3, %v909
          %v911 = vrot.slane %v503, %v910
          %913 = vbcast.lane.b32.xlu0 %v911, 256
          %v914 = vpop.permute.xlu0 %913
          %s916 = sor.u32 256, 8
          %917 = vbcast.lane.b32.xlu0 %v911, %s916
          %v918 = vpop.permute.xlu0 %917
          %s920 = sor.u32 256, 16
          %921 = vbcast.lane.b32.xlu0 %v911, %s920
          %v922 = vpop.permute.xlu0 %921
          %s924 = sor.u32 256, 24
          %925 = vbcast.lane.b32.xlu0 %v911, %s924
          %v926 = vpop.permute.xlu0 %925
          %s928 = sor.u32 256, 32
          %929 = vbcast.lane.b32.xlu0 %v911, %s928
          %v930 = vpop.permute.xlu0 %929
          %s932 = sor.u32 256, 40
          %933 = vbcast.lane.b32.xlu0 %v911, %s932
          %v934 = vpop.permute.xlu0 %933
          %s936 = sor.u32 256, 48
          %937 = vbcast.lane.b32.xlu0 %v911, %s936
          %v938 = vpop.permute.xlu0 %937
          %s940 = sor.u32 256, 56
          %941 = vbcast.lane.b32.xlu0 %v911, %s940
          %v942 = vpop.permute.xlu0 %941
          %s944 = sor.u32 256, 64
          %945 = vbcast.lane.b32.xlu0 %v911, %s944
          %v946 = vpop.permute.xlu0 %945
          %s948 = sor.u32 256, 72
          %949 = vbcast.lane.b32.xlu0 %v911, %s948
          %v950 = vpop.permute.xlu0 %949
          %s952 = sor.u32 256, 80
          %953 = vbcast.lane.b32.xlu0 %v911, %s952
          %v954 = vpop.permute.xlu0 %953
          %s956 = sor.u32 256, 88
          %957 = vbcast.lane.b32.xlu0 %v911, %s956
          %v958 = vpop.permute.xlu0 %957
          %s960 = sor.u32 256, 96
          %961 = vbcast.lane.b32.xlu0 %v911, %s960
          %v962 = vpop.permute.xlu0 %961
          %s964 = sor.u32 256, 104
          %965 = vbcast.lane.b32.xlu0 %v911, %s964
          %v966 = vpop.permute.xlu0 %965
          %s968 = sor.u32 256, 112
          %969 = vbcast.lane.b32.xlu0 %v911, %s968
          %v970 = vpop.permute.xlu0 %969
          %s972 = sor.u32 256, 120
          %973 = vbcast.lane.b32.xlu0 %v911, %s972
          %v974 = vpop.permute.xlu0 %973
          %v975 = vlaneseq
          %v976 = vshrl.u32 %v975, 7
          %v977 = vsub.s32 3, %v976
          %v978 = vrot.slane %v504, %v977
          %980 = vbcast.lane.b32.xlu0 %v978, 256
          %v981 = vpop.permute.xlu0 %980
          %s983 = sor.u32 256, 8
          %984 = vbcast.lane.b32.xlu0 %v978, %s983
          %v985 = vpop.permute.xlu0 %984
          %s987 = sor.u32 256, 16
          %988 = vbcast.lane.b32.xlu0 %v978, %s987
          %v989 = vpop.permute.xlu0 %988
          %s991 = sor.u32 256, 24
          %992 = vbcast.lane.b32.xlu0 %v978, %s991
          %v993 = vpop.permute.xlu0 %992
          %s995 = sor.u32 256, 32
          %996 = vbcast.lane.b32.xlu0 %v978, %s995
          %v997 = vpop.permute.xlu0 %996
          %s999 = sor.u32 256, 40
          %1000 = vbcast.lane.b32.xlu0 %v978, %s999
          %v1001 = vpop.permute.xlu0 %1000
          %s1003 = sor.u32 256, 48
          %1004 = vbcast.lane.b32.xlu0 %v978, %s1003
          %v1005 = vpop.permute.xlu0 %1004
          %s1007 = sor.u32 256, 56
          %1008 = vbcast.lane.b32.xlu0 %v978, %s1007
          %v1009 = vpop.permute.xlu0 %1008
          %s1011 = sor.u32 256, 64
          %1012 = vbcast.lane.b32.xlu0 %v978, %s1011
          %v1013 = vpop.permute.xlu0 %1012
          %s1015 = sor.u32 256, 72
          %1016 = vbcast.lane.b32.xlu0 %v978, %s1015
          %v1017 = vpop.permute.xlu0 %1016
          %s1019 = sor.u32 256, 80
          %1020 = vbcast.lane.b32.xlu0 %v978, %s1019
          %v1021 = vpop.permute.xlu0 %1020
          %s1023 = sor.u32 256, 88
          %1024 = vbcast.lane.b32.xlu0 %v978, %s1023
          %v1025 = vpop.permute.xlu0 %1024
          %s1027 = sor.u32 256, 96
          %1028 = vbcast.lane.b32.xlu0 %v978, %s1027
          %v1029 = vpop.permute.xlu0 %1028
          %s1031 = sor.u32 256, 104
          %1032 = vbcast.lane.b32.xlu0 %v978, %s1031
          %v1033 = vpop.permute.xlu0 %1032
          %s1035 = sor.u32 256, 112
          %1036 = vbcast.lane.b32.xlu0 %v978, %s1035
          %v1037 = vpop.permute.xlu0 %1036
          %s1039 = sor.u32 256, 120
          %1040 = vbcast.lane.b32.xlu0 %v978, %s1039
          %v1041 = vpop.permute.xlu0 %1040
          %v1042 = vlaneseq
          %v1043 = vshrl.u32 %v1042, 7
          %v1044 = vsub.s32 4, %v1043
          %v1045 = vrot.slane %v503, %v1044
          %1047 = vbcast.lane.b32.xlu0 %v1045, 256
          %v1048 = vpop.permute.xlu0 %1047
          %s1050 = sor.u32 256, 8
          %1051 = vbcast.lane.b32.xlu0 %v1045, %s1050
          %v1052 = vpop.permute.xlu0 %1051
          %s1054 = sor.u32 256, 16
          %1055 = vbcast.lane.b32.xlu0 %v1045, %s1054
          %v1056 = vpop.permute.xlu0 %1055
          %s1058 = sor.u32 256, 24
          %1059 = vbcast.lane.b32.xlu0 %v1045, %s1058
          %v1060 = vpop.permute.xlu0 %1059
          %s1062 = sor.u32 256, 32
          %1063 = vbcast.lane.b32.xlu0 %v1045, %s1062
          %v1064 = vpop.permute.xlu0 %1063
          %s1066 = sor.u32 256, 40
          %1067 = vbcast.lane.b32.xlu0 %v1045, %s1066
          %v1068 = vpop.permute.xlu0 %1067
          %s1070 = sor.u32 256, 48
          %1071 = vbcast.lane.b32.xlu0 %v1045, %s1070
          %v1072 = vpop.permute.xlu0 %1071
          %s1074 = sor.u32 256, 56
          %1075 = vbcast.lane.b32.xlu0 %v1045, %s1074
          %v1076 = vpop.permute.xlu0 %1075
          %s1078 = sor.u32 256, 64
          %1079 = vbcast.lane.b32.xlu0 %v1045, %s1078
          %v1080 = vpop.permute.xlu0 %1079
          %s1082 = sor.u32 256, 72
          %1083 = vbcast.lane.b32.xlu0 %v1045, %s1082
          %v1084 = vpop.permute.xlu0 %1083
          %s1086 = sor.u32 256, 80
          %1087 = vbcast.lane.b32.xlu0 %v1045, %s1086
          %v1088 = vpop.permute.xlu0 %1087
          %s1090 = sor.u32 256, 88
          %1091 = vbcast.lane.b32.xlu0 %v1045, %s1090
          %v1092 = vpop.permute.xlu0 %1091
          %s1094 = sor.u32 256, 96
          %1095 = vbcast.lane.b32.xlu0 %v1045, %s1094
          %v1096 = vpop.permute.xlu0 %1095
          %s1098 = sor.u32 256, 104
          %1099 = vbcast.lane.b32.xlu0 %v1045, %s1098
          %v1100 = vpop.permute.xlu0 %1099
          %s1102 = sor.u32 256, 112
          %1103 = vbcast.lane.b32.xlu0 %v1045, %s1102
          %v1104 = vpop.permute.xlu0 %1103
          %s1106 = sor.u32 256, 120
          %1107 = vbcast.lane.b32.xlu0 %v1045, %s1106
          %v1108 = vpop.permute.xlu0 %1107
          %v1109 = vlaneseq
          %v1110 = vshrl.u32 %v1109, 7
          %v1111 = vsub.s32 4, %v1110
          %v1112 = vrot.slane %v504, %v1111
          %1114 = vbcast.lane.b32.xlu0 %v1112, 256
          %v1115 = vpop.permute.xlu0 %1114
          %s1117 = sor.u32 256, 8
          %1118 = vbcast.lane.b32.xlu0 %v1112, %s1117
          %v1119 = vpop.permute.xlu0 %1118
          %s1121 = sor.u32 256, 16
          %1122 = vbcast.lane.b32.xlu0 %v1112, %s1121
          %v1123 = vpop.permute.xlu0 %1122
          %s1125 = sor.u32 256, 24
          %1126 = vbcast.lane.b32.xlu0 %v1112, %s1125
          %v1127 = vpop.permute.xlu0 %1126
          %s1129 = sor.u32 256, 32
          %1130 = vbcast.lane.b32.xlu0 %v1112, %s1129
          %v1131 = vpop.permute.xlu0 %1130
          %s1133 = sor.u32 256, 40
          %1134 = vbcast.lane.b32.xlu0 %v1112, %s1133
          %v1135 = vpop.permute.xlu0 %1134
          %s1137 = sor.u32 256, 48
          %1138 = vbcast.lane.b32.xlu0 %v1112, %s1137
          %v1139 = vpop.permute.xlu0 %1138
          %s1141 = sor.u32 256, 56
          %1142 = vbcast.lane.b32.xlu0 %v1112, %s1141
          %v1143 = vpop.permute.xlu0 %1142
          %s1145 = sor.u32 256, 64
          %1146 = vbcast.lane.b32.xlu0 %v1112, %s1145
          %v1147 = vpop.permute.xlu0 %1146
          %s1149 = sor.u32 256, 72
          %1150 = vbcast.lane.b32.xlu0 %v1112, %s1149
          %v1151 = vpop.permute.xlu0 %1150
          %s1153 = sor.u32 256, 80
          %1154 = vbcast.lane.b32.xlu0 %v1112, %s1153
          %v1155 = vpop.permute.xlu0 %1154
          %s1157 = sor.u32 256, 88
          %1158 = vbcast.lane.b32.xlu0 %v1112, %s1157
          %v1159 = vpop.permute.xlu0 %1158
          %s1161 = sor.u32 256, 96
          %1162 = vbcast.lane.b32.xlu0 %v1112, %s1161
          %v1163 = vpop.permute.xlu0 %1162
          %s1165 = sor.u32 256, 104
          %1166 = vbcast.lane.b32.xlu0 %v1112, %s1165
          %v1167 = vpop.permute.xlu0 %1166
          %s1169 = sor.u32 256, 112
          %1170 = vbcast.lane.b32.xlu0 %v1112, %s1169
          %v1171 = vpop.permute.xlu0 %1170
          %s1173 = sor.u32 256, 120
          %1174 = vbcast.lane.b32.xlu0 %v1112, %s1173
          %v1175 = vpop.permute.xlu0 %1174
          %v1176 = vlaneseq
          %v1177 = vshrl.u32 %v1176, 7
          %v1178 = vsub.s32 5, %v1177
          %v1179 = vrot.slane %v503, %v1178
          %1181 = vbcast.lane.b32.xlu0 %v1179, 256
          %v1182 = vpop.permute.xlu0 %1181
          %s1184 = sor.u32 256, 8
          %1185 = vbcast.lane.b32.xlu0 %v1179, %s1184
          %v1186 = vpop.permute.xlu0 %1185
          %s1188 = sor.u32 256, 16
          %1189 = vbcast.lane.b32.xlu0 %v1179, %s1188
          %v1190 = vpop.permute.xlu0 %1189
          %s1192 = sor.u32 256, 24
          %1193 = vbcast.lane.b32.xlu0 %v1179, %s1192
          %v1194 = vpop.permute.xlu0 %1193
          %s1196 = sor.u32 256, 32
          %1197 = vbcast.lane.b32.xlu0 %v1179, %s1196
          %v1198 = vpop.permute.xlu0 %1197
          %s1200 = sor.u32 256, 40
          %1201 = vbcast.lane.b32.xlu0 %v1179, %s1200
          %v1202 = vpop.permute.xlu0 %1201
          %s1204 = sor.u32 256, 48
          %1205 = vbcast.lane.b32.xlu0 %v1179, %s1204
          %v1206 = vpop.permute.xlu0 %1205
          %s1208 = sor.u32 256, 56
          %1209 = vbcast.lane.b32.xlu0 %v1179, %s1208
          %v1210 = vpop.permute.xlu0 %1209
          %s1212 = sor.u32 256, 64
          %1213 = vbcast.lane.b32.xlu0 %v1179, %s1212
          %v1214 = vpop.permute.xlu0 %1213
          %s1216 = sor.u32 256, 72
          %1217 = vbcast.lane.b32.xlu0 %v1179, %s1216
          %v1218 = vpop.permute.xlu0 %1217
          %s1220 = sor.u32 256, 80
          %1221 = vbcast.lane.b32.xlu0 %v1179, %s1220
          %v1222 = vpop.permute.xlu0 %1221
          %s1224 = sor.u32 256, 88
          %1225 = vbcast.lane.b32.xlu0 %v1179, %s1224
          %v1226 = vpop.permute.xlu0 %1225
          %s1228 = sor.u32 256, 96
          %1229 = vbcast.lane.b32.xlu0 %v1179, %s1228
          %v1230 = vpop.permute.xlu0 %1229
          %s1232 = sor.u32 256, 104
          %1233 = vbcast.lane.b32.xlu0 %v1179, %s1232
          %v1234 = vpop.permute.xlu0 %1233
          %s1236 = sor.u32 256, 112
          %1237 = vbcast.lane.b32.xlu0 %v1179, %s1236
          %v1238 = vpop.permute.xlu0 %1237
          %s1240 = sor.u32 256, 120
          %1241 = vbcast.lane.b32.xlu0 %v1179, %s1240
          %v1242 = vpop.permute.xlu0 %1241
          %v1243 = vlaneseq
          %v1244 = vshrl.u32 %v1243, 7
          %v1245 = vsub.s32 5, %v1244
          %v1246 = vrot.slane %v504, %v1245
          %1248 = vbcast.lane.b32.xlu0 %v1246, 256
          %v1249 = vpop.permute.xlu0 %1248
          %s1251 = sor.u32 256, 8
          %1252 = vbcast.lane.b32.xlu0 %v1246, %s1251
          %v1253 = vpop.permute.xlu0 %1252
          %s1255 = sor.u32 256, 16
          %1256 = vbcast.lane.b32.xlu0 %v1246, %s1255
          %v1257 = vpop.permute.xlu0 %1256
          %s1259 = sor.u32 256, 24
          %1260 = vbcast.lane.b32.xlu0 %v1246, %s1259
          %v1261 = vpop.permute.xlu0 %1260
          %s1263 = sor.u32 256, 32
          %1264 = vbcast.lane.b32.xlu0 %v1246, %s1263
          %v1265 = vpop.permute.xlu0 %1264
          %s1267 = sor.u32 256, 40
          %1268 = vbcast.lane.b32.xlu0 %v1246, %s1267
          %v1269 = vpop.permute.xlu0 %1268
          %s1271 = sor.u32 256, 48
          %1272 = vbcast.lane.b32.xlu0 %v1246, %s1271
          %v1273 = vpop.permute.xlu0 %1272
          %s1275 = sor.u32 256, 56
          %1276 = vbcast.lane.b32.xlu0 %v1246, %s1275
          %v1277 = vpop.permute.xlu0 %1276
          %s1279 = sor.u32 256, 64
          %1280 = vbcast.lane.b32.xlu0 %v1246, %s1279
          %v1281 = vpop.permute.xlu0 %1280
          %s1283 = sor.u32 256, 72
          %1284 = vbcast.lane.b32.xlu0 %v1246, %s1283
          %v1285 = vpop.permute.xlu0 %1284
          %s1287 = sor.u32 256, 80
          %1288 = vbcast.lane.b32.xlu0 %v1246, %s1287
          %v1289 = vpop.permute.xlu0 %1288
          %s1291 = sor.u32 256, 88
          %1292 = vbcast.lane.b32.xlu0 %v1246, %s1291
          %v1293 = vpop.permute.xlu0 %1292
          %s1295 = sor.u32 256, 96
          %1296 = vbcast.lane.b32.xlu0 %v1246, %s1295
          %v1297 = vpop.permute.xlu0 %1296
          %s1299 = sor.u32 256, 104
          %1300 = vbcast.lane.b32.xlu0 %v1246, %s1299
          %v1301 = vpop.permute.xlu0 %1300
          %s1303 = sor.u32 256, 112
          %1304 = vbcast.lane.b32.xlu0 %v1246, %s1303
          %v1305 = vpop.permute.xlu0 %1304
          %s1307 = sor.u32 256, 120
          %1308 = vbcast.lane.b32.xlu0 %v1246, %s1307
          %v1309 = vpop.permute.xlu0 %1308
          %v1310 = vlaneseq
          %v1311 = vshrl.u32 %v1310, 7
          %v1312 = vsub.s32 6, %v1311
          %v1313 = vrot.slane %v503, %v1312
          %1315 = vbcast.lane.b32.xlu0 %v1313, 256
          %v1316 = vpop.permute.xlu0 %1315
          %s1318 = sor.u32 256, 8
          %1319 = vbcast.lane.b32.xlu0 %v1313, %s1318
          %v1320 = vpop.permute.xlu0 %1319
          %s1322 = sor.u32 256, 16
          %1323 = vbcast.lane.b32.xlu0 %v1313, %s1322
          %v1324 = vpop.permute.xlu0 %1323
          %s1326 = sor.u32 256, 24
          %1327 = vbcast.lane.b32.xlu0 %v1313, %s1326
          %v1328 = vpop.permute.xlu0 %1327
          %s1330 = sor.u32 256, 32
          %1331 = vbcast.lane.b32.xlu0 %v1313, %s1330
          %v1332 = vpop.permute.xlu0 %1331
          %s1334 = sor.u32 256, 40
          %1335 = vbcast.lane.b32.xlu0 %v1313, %s1334
          %v1336 = vpop.permute.xlu0 %1335
          %s1338 = sor.u32 256, 48
          %1339 = vbcast.lane.b32.xlu0 %v1313, %s1338
          %v1340 = vpop.permute.xlu0 %1339
          %s1342 = sor.u32 256, 56
          %1343 = vbcast.lane.b32.xlu0 %v1313, %s1342
          %v1344 = vpop.permute.xlu0 %1343
          %s1346 = sor.u32 256, 64
          %1347 = vbcast.lane.b32.xlu0 %v1313, %s1346
          %v1348 = vpop.permute.xlu0 %1347
          %s1350 = sor.u32 256, 72
          %1351 = vbcast.lane.b32.xlu0 %v1313, %s1350
          %v1352 = vpop.permute.xlu0 %1351
          %s1354 = sor.u32 256, 80
          %1355 = vbcast.lane.b32.xlu0 %v1313, %s1354
          %v1356 = vpop.permute.xlu0 %1355
          %s1358 = sor.u32 256, 88
          %1359 = vbcast.lane.b32.xlu0 %v1313, %s1358
          %v1360 = vpop.permute.xlu0 %1359
          %s1362 = sor.u32 256, 96
          %1363 = vbcast.lane.b32.xlu0 %v1313, %s1362
          %v1364 = vpop.permute.xlu0 %1363
          %s1366 = sor.u32 256, 104
          %1367 = vbcast.lane.b32.xlu0 %v1313, %s1366
          %v1368 = vpop.permute.xlu0 %1367
          %s1370 = sor.u32 256, 112
          %1371 = vbcast.lane.b32.xlu0 %v1313, %s1370
          %v1372 = vpop.permute.xlu0 %1371
          %s1374 = sor.u32 256, 120
          %1375 = vbcast.lane.b32.xlu0 %v1313, %s1374
          %v1376 = vpop.permute.xlu0 %1375
          %v1377 = vlaneseq
          %v1378 = vshrl.u32 %v1377, 7
          %v1379 = vsub.s32 6, %v1378
          %v1380 = vrot.slane %v504, %v1379
          %1382 = vbcast.lane.b32.xlu0 %v1380, 256
          %v1383 = vpop.permute.xlu0 %1382
          %s1385 = sor.u32 256, 8
          %1386 = vbcast.lane.b32.xlu0 %v1380, %s1385
          %v1387 = vpop.permute.xlu0 %1386
          %s1389 = sor.u32 256, 16
          %1390 = vbcast.lane.b32.xlu0 %v1380, %s1389
          %v1391 = vpop.permute.xlu0 %1390
          %s1393 = sor.u32 256, 24
          %1394 = vbcast.lane.b32.xlu0 %v1380, %s1393
          %v1395 = vpop.permute.xlu0 %1394
          %s1397 = sor.u32 256, 32
          %1398 = vbcast.lane.b32.xlu0 %v1380, %s1397
          %v1399 = vpop.permute.xlu0 %1398
          %s1401 = sor.u32 256, 40
          %1402 = vbcast.lane.b32.xlu0 %v1380, %s1401
          %v1403 = vpop.permute.xlu0 %1402
          %s1405 = sor.u32 256, 48
          %1406 = vbcast.lane.b32.xlu0 %v1380, %s1405
          %v1407 = vpop.permute.xlu0 %1406
          %s1409 = sor.u32 256, 56
          %1410 = vbcast.lane.b32.xlu0 %v1380, %s1409
          %v1411 = vpop.permute.xlu0 %1410
          %s1413 = sor.u32 256, 64
          %1414 = vbcast.lane.b32.xlu0 %v1380, %s1413
          %v1415 = vpop.permute.xlu0 %1414
          %s1417 = sor.u32 256, 72
          %1418 = vbcast.lane.b32.xlu0 %v1380, %s1417
          %v1419 = vpop.permute.xlu0 %1418
          %s1421 = sor.u32 256, 80
          %1422 = vbcast.lane.b32.xlu0 %v1380, %s1421
          %v1423 = vpop.permute.xlu0 %1422
          %s1425 = sor.u32 256, 88
          %1426 = vbcast.lane.b32.xlu0 %v1380, %s1425
          %v1427 = vpop.permute.xlu0 %1426
          %s1429 = sor.u32 256, 96
          %1430 = vbcast.lane.b32.xlu0 %v1380, %s1429
          %v1431 = vpop.permute.xlu0 %1430
          %s1433 = sor.u32 256, 104
          %1434 = vbcast.lane.b32.xlu0 %v1380, %s1433
          %v1435 = vpop.permute.xlu0 %1434
          %s1437 = sor.u32 256, 112
          %1438 = vbcast.lane.b32.xlu0 %v1380, %s1437
          %v1439 = vpop.permute.xlu0 %1438
          %s1441 = sor.u32 256, 120
          %1442 = vbcast.lane.b32.xlu0 %v1380, %s1441
          %v1443 = vpop.permute.xlu0 %1442
          %v1444 = vlaneseq
          %v1445 = vshrl.u32 %v1444, 7
          %v1446 = vsub.s32 7, %v1445
          %v1447 = vrot.slane %v503, %v1446
          %1449 = vbcast.lane.b32.xlu0 %v1447, 256
          %v1450 = vpop.permute.xlu0 %1449
          %s1452 = sor.u32 256, 8
          %1453 = vbcast.lane.b32.xlu0 %v1447, %s1452
          %v1454 = vpop.permute.xlu0 %1453
          %s1456 = sor.u32 256, 16
          %1457 = vbcast.lane.b32.xlu0 %v1447, %s1456
          %v1458 = vpop.permute.xlu0 %1457
          %s1460 = sor.u32 256, 24
          %1461 = vbcast.lane.b32.xlu0 %v1447, %s1460
          %v1462 = vpop.permute.xlu0 %1461
          %s1464 = sor.u32 256, 32
          %1465 = vbcast.lane.b32.xlu0 %v1447, %s1464
          %v1466 = vpop.permute.xlu0 %1465
          %s1468 = sor.u32 256, 40
          %1469 = vbcast.lane.b32.xlu0 %v1447, %s1468
          %v1470 = vpop.permute.xlu0 %1469
          %s1472 = sor.u32 256, 48
          %1473 = vbcast.lane.b32.xlu0 %v1447, %s1472
          %v1474 = vpop.permute.xlu0 %1473
          %s1476 = sor.u32 256, 56
          %1477 = vbcast.lane.b32.xlu0 %v1447, %s1476
          %v1478 = vpop.permute.xlu0 %1477
          %s1480 = sor.u32 256, 64
          %1481 = vbcast.lane.b32.xlu0 %v1447, %s1480
          %v1482 = vpop.permute.xlu0 %1481
          %s1484 = sor.u32 256, 72
          %1485 = vbcast.lane.b32.xlu0 %v1447, %s1484
          %v1486 = vpop.permute.xlu0 %1485
          %s1488 = sor.u32 256, 80
          %1489 = vbcast.lane.b32.xlu0 %v1447, %s1488
          %v1490 = vpop.permute.xlu0 %1489
          %s1492 = sor.u32 256, 88
          %1493 = vbcast.lane.b32.xlu0 %v1447, %s1492
          %v1494 = vpop.permute.xlu0 %1493
          %s1496 = sor.u32 256, 96
          %1497 = vbcast.lane.b32.xlu0 %v1447, %s1496
          %v1498 = vpop.permute.xlu0 %1497
          %s1500 = sor.u32 256, 104
          %1501 = vbcast.lane.b32.xlu0 %v1447, %s1500
          %v1502 = vpop.permute.xlu0 %1501
          %s1504 = sor.u32 256, 112
          %1505 = vbcast.lane.b32.xlu0 %v1447, %s1504
          %v1506 = vpop.permute.xlu0 %1505
          %s1508 = sor.u32 256, 120
          %1509 = vbcast.lane.b32.xlu0 %v1447, %s1508
          %v1510 = vpop.permute.xlu0 %1509
          %v1511 = vlaneseq
          %v1512 = vshrl.u32 %v1511, 7
          %v1513 = vsub.s32 7, %v1512
          %v1514 = vrot.slane %v504, %v1513
          %1516 = vbcast.lane.b32.xlu0 %v1514, 256
          %v1517 = vpop.permute.xlu0 %1516
          %s1519 = sor.u32 256, 8
          %1520 = vbcast.lane.b32.xlu0 %v1514, %s1519
          %v1521 = vpop.permute.xlu0 %1520
          %s1523 = sor.u32 256, 16
          %1524 = vbcast.lane.b32.xlu0 %v1514, %s1523
          %v1525 = vpop.permute.xlu0 %1524
          %s1527 = sor.u32 256, 24
          %1528 = vbcast.lane.b32.xlu0 %v1514, %s1527
          %v1529 = vpop.permute.xlu0 %1528
          %s1531 = sor.u32 256, 32
          %1532 = vbcast.lane.b32.xlu0 %v1514, %s1531
          %v1533 = vpop.permute.xlu0 %1532
          %s1535 = sor.u32 256, 40
          %1536 = vbcast.lane.b32.xlu0 %v1514, %s1535
          %v1537 = vpop.permute.xlu0 %1536
          %s1539 = sor.u32 256, 48
          %1540 = vbcast.lane.b32.xlu0 %v1514, %s1539
          %v1541 = vpop.permute.xlu0 %1540
          %s1543 = sor.u32 256, 56
          %1544 = vbcast.lane.b32.xlu0 %v1514, %s1543
          %v1545 = vpop.permute.xlu0 %1544
          %s1547 = sor.u32 256, 64
          %1548 = vbcast.lane.b32.xlu0 %v1514, %s1547
          %v1549 = vpop.permute.xlu0 %1548
          %s1551 = sor.u32 256, 72
          %1552 = vbcast.lane.b32.xlu0 %v1514, %s1551
          %v1553 = vpop.permute.xlu0 %1552
          %s1555 = sor.u32 256, 80
          %1556 = vbcast.lane.b32.xlu0 %v1514, %s1555
          %v1557 = vpop.permute.xlu0 %1556
          %s1559 = sor.u32 256, 88
          %1560 = vbcast.lane.b32.xlu0 %v1514, %s1559
          %v1561 = vpop.permute.xlu0 %1560
          %s1563 = sor.u32 256, 96
          %1564 = vbcast.lane.b32.xlu0 %v1514, %s1563
          %v1565 = vpop.permute.xlu0 %1564
          %s1567 = sor.u32 256, 104
          %1568 = vbcast.lane.b32.xlu0 %v1514, %s1567
          %v1569 = vpop.permute.xlu0 %1568
          %s1571 = sor.u32 256, 112
          %1572 = vbcast.lane.b32.xlu0 %v1514, %s1571
          %v1573 = vpop.permute.xlu0 %1572
          %s1575 = sor.u32 256, 120
          %1576 = vbcast.lane.b32.xlu0 %v1514, %s1575
          %v1577 = vpop.permute.xlu0 %1576
          %vm1578 = vcmp.eq.s32.totalorder %v491, %v512
          %vm1579 = vcmp.eq.s32.totalorder %v491, %v516
          %vm1580 = vcmp.eq.s32.totalorder %v491, %v520
          %vm1581 = vcmp.eq.s32.totalorder %v491, %v524
          %vm1582 = vcmp.eq.s32.totalorder %v491, %v528
          %vm1583 = vcmp.eq.s32.totalorder %v491, %v532
          %vm1584 = vcmp.eq.s32.totalorder %v491, %v536
          %vm1585 = vcmp.eq.s32.totalorder %v491, %v540
          %vm1586 = vcmp.eq.s32.totalorder %v491, %v544
          %vm1587 = vcmp.eq.s32.totalorder %v491, %v548
          %vm1588 = vcmp.eq.s32.totalorder %v491, %v552
          %vm1589 = vcmp.eq.s32.totalorder %v491, %v556
          %vm1590 = vcmp.eq.s32.totalorder %v491, %v560
          %vm1591 = vcmp.eq.s32.totalorder %v491, %v564
          %vm1592 = vcmp.eq.s32.totalorder %v491, %v568
          %vm1593 = vcmp.eq.s32.totalorder %v491, %v572
          %vm1594 = vcmp.eq.s32.totalorder %v491, %v579
          %vm1595 = vcmp.eq.s32.totalorder %v491, %v583
          %vm1596 = vcmp.eq.s32.totalorder %v491, %v587
          %vm1597 = vcmp.eq.s32.totalorder %v491, %v591
          %vm1598 = vcmp.eq.s32.totalorder %v491, %v595
          %vm1599 = vcmp.eq.s32.totalorder %v491, %v599
          %vm1600 = vcmp.eq.s32.totalorder %v491, %v603
          %vm1601 = vcmp.eq.s32.totalorder %v491, %v607
          %vm1602 = vcmp.eq.s32.totalorder %v491, %v611
          %vm1603 = vcmp.eq.s32.totalorder %v491, %v615
          %vm1604 = vcmp.eq.s32.totalorder %v491, %v619
          %vm1605 = vcmp.eq.s32.totalorder %v491, %v623
          %vm1606 = vcmp.eq.s32.totalorder %v491, %v627
          %vm1607 = vcmp.eq.s32.totalorder %v491, %v631
          %vm1608 = vcmp.eq.s32.totalorder %v491, %v635
          %vm1609 = vcmp.eq.s32.totalorder %v491, %v639
          %vm1610 = vcmp.eq.s32.totalorder %v491, %v646
          %vm1611 = vcmp.eq.s32.totalorder %v491, %v650
          %vm1612 = vcmp.eq.s32.totalorder %v491, %v654
          %vm1613 = vcmp.eq.s32.totalorder %v491, %v658
          %vm1614 = vcmp.eq.s32.totalorder %v491, %v662
          %vm1615 = vcmp.eq.s32.totalorder %v491, %v666
          %vm1616 = vcmp.eq.s32.totalorder %v491, %v670
          %vm1617 = vcmp.eq.s32.totalorder %v491, %v674
          %vm1618 = vcmp.eq.s32.totalorder %v491, %v678
          %vm1619 = vcmp.eq.s32.totalorder %v491, %v682
          %vm1620 = vcmp.eq.s32.totalorder %v491, %v686
          %vm1621 = vcmp.eq.s32.totalorder %v491, %v690
          %vm1622 = vcmp.eq.s32.totalorder %v491, %v694
          %vm1623 = vcmp.eq.s32.totalorder %v491, %v698
          %vm1624 = vcmp.eq.s32.totalorder %v491, %v702
          %vm1625 = vcmp.eq.s32.totalorder %v491, %v706
          %vm1626 = vcmp.eq.s32.totalorder %v491, %v713
          %vm1627 = vcmp.eq.s32.totalorder %v491, %v717
          %vm1628 = vcmp.eq.s32.totalorder %v491, %v721
          %vm1629 = vcmp.eq.s32.totalorder %v491, %v725
          %vm1630 = vcmp.eq.s32.totalorder %v491, %v729
          %vm1631 = vcmp.eq.s32.totalorder %v491, %v733
          %vm1632 = vcmp.eq.s32.totalorder %v491, %v737
          %vm1633 = vcmp.eq.s32.totalorder %v491, %v741
          %vm1634 = vcmp.eq.s32.totalorder %v491, %v745
          %vm1635 = vcmp.eq.s32.totalorder %v491, %v749
          %vm1636 = vcmp.eq.s32.totalorder %v491, %v753
          %vm1637 = vcmp.eq.s32.totalorder %v491, %v757
          %vm1638 = vcmp.eq.s32.totalorder %v491, %v761
          %vm1639 = vcmp.eq.s32.totalorder %v491, %v765
          %vm1640 = vcmp.eq.s32.totalorder %v491, %v769
          %vm1641 = vcmp.eq.s32.totalorder %v491, %v773
          %vm1642 = vcmp.eq.s32.totalorder %v491, %v780
          %vm1643 = vcmp.eq.s32.totalorder %v491, %v784
          %vm1644 = vcmp.eq.s32.totalorder %v491, %v788
          %vm1645 = vcmp.eq.s32.totalorder %v491, %v792
          %vm1646 = vcmp.eq.s32.totalorder %v491, %v796
          %vm1647 = vcmp.eq.s32.totalorder %v491, %v800
          %vm1648 = vcmp.eq.s32.totalorder %v491, %v804
          %vm1649 = vcmp.eq.s32.totalorder %v491, %v808
          %vm1650 = vcmp.eq.s32.totalorder %v491, %v812
          %vm1651 = vcmp.eq.s32.totalorder %v491, %v816
          %vm1652 = vcmp.eq.s32.totalorder %v491, %v820
          %vm1653 = vcmp.eq.s32.totalorder %v491, %v824
          %vm1654 = vcmp.eq.s32.totalorder %v491, %v828
          %vm1655 = vcmp.eq.s32.totalorder %v491, %v832
          %vm1656 = vcmp.eq.s32.totalorder %v491, %v836
          %vm1657 = vcmp.eq.s32.totalorder %v491, %v840
          %vm1658 = vcmp.eq.s32.totalorder %v491, %v847
          %vm1659 = vcmp.eq.s32.totalorder %v491, %v851
          %vm1660 = vcmp.eq.s32.totalorder %v491, %v855
          %vm1661 = vcmp.eq.s32.totalorder %v491, %v859
          %vm1662 = vcmp.eq.s32.totalorder %v491, %v863
          %vm1663 = vcmp.eq.s32.totalorder %v491, %v867
          %vm1664 = vcmp.eq.s32.totalorder %v491, %v871
          %vm1665 = vcmp.eq.s32.totalorder %v491, %v875
          %vm1666 = vcmp.eq.s32.totalorder %v491, %v879
          %vm1667 = vcmp.eq.s32.totalorder %v491, %v883
          %vm1668 = vcmp.eq.s32.totalorder %v491, %v887
          %vm1669 = vcmp.eq.s32.totalorder %v491, %v891
          %vm1670 = vcmp.eq.s32.totalorder %v491, %v895
          %vm1671 = vcmp.eq.s32.totalorder %v491, %v899
          %vm1672 = vcmp.eq.s32.totalorder %v491, %v903
          %vm1673 = vcmp.eq.s32.totalorder %v491, %v907
          %vm1674 = vcmp.eq.s32.totalorder %v491, %v914
          %vm1675 = vcmp.eq.s32.totalorder %v491, %v918
          %vm1676 = vcmp.eq.s32.totalorder %v491, %v922
          %vm1677 = vcmp.eq.s32.totalorder %v491, %v926
          %vm1678 = vcmp.eq.s32.totalorder %v491, %v930
          %vm1679 = vcmp.eq.s32.totalorder %v491, %v934
          %vm1680 = vcmp.eq.s32.totalorder %v491, %v938
          %vm1681 = vcmp.eq.s32.totalorder %v491, %v942
          %vm1682 = vcmp.eq.s32.totalorder %v491, %v946
          %vm1683 = vcmp.eq.s32.totalorder %v491, %v950
          %vm1684 = vcmp.eq.s32.totalorder %v491, %v954
          %vm1685 = vcmp.eq.s32.totalorder %v491, %v958
          %vm1686 = vcmp.eq.s32.totalorder %v491, %v962
          %vm1687 = vcmp.eq.s32.totalorder %v491, %v966
          %vm1688 = vcmp.eq.s32.totalorder %v491, %v970
          %vm1689 = vcmp.eq.s32.totalorder %v491, %v974
          %vm1690 = vcmp.eq.s32.totalorder %v491, %v981
          %vm1691 = vcmp.eq.s32.totalorder %v491, %v985
          %vm1692 = vcmp.eq.s32.totalorder %v491, %v989
          %vm1693 = vcmp.eq.s32.totalorder %v491, %v993
          %vm1694 = vcmp.eq.s32.totalorder %v491, %v997
          %vm1695 = vcmp.eq.s32.totalorder %v491, %v1001
          %vm1696 = vcmp.eq.s32.totalorder %v491, %v1005
          %vm1697 = vcmp.eq.s32.totalorder %v491, %v1009
          %vm1698 = vcmp.eq.s32.totalorder %v491, %v1013
          %vm1699 = vcmp.eq.s32.totalorder %v491, %v1017
          %vm1700 = vcmp.eq.s32.totalorder %v491, %v1021
          %vm1701 = vcmp.eq.s32.totalorder %v491, %v1025
          %vm1702 = vcmp.eq.s32.totalorder %v491, %v1029
          %vm1703 = vcmp.eq.s32.totalorder %v491, %v1033
          %vm1704 = vcmp.eq.s32.totalorder %v491, %v1037
          %vm1705 = vcmp.eq.s32.totalorder %v491, %v1041
          %vm1706 = vcmp.eq.s32.totalorder %v491, %v1048
          %vm1707 = vcmp.eq.s32.totalorder %v491, %v1052
          %vm1708 = vcmp.eq.s32.totalorder %v491, %v1056
          %vm1709 = vcmp.eq.s32.totalorder %v491, %v1060
          %vm1710 = vcmp.eq.s32.totalorder %v491, %v1064
          %vm1711 = vcmp.eq.s32.totalorder %v491, %v1068
          %vm1712 = vcmp.eq.s32.totalorder %v491, %v1072
          %vm1713 = vcmp.eq.s32.totalorder %v491, %v1076
          %vm1714 = vcmp.eq.s32.totalorder %v491, %v1080
          %vm1715 = vcmp.eq.s32.totalorder %v491, %v1084
          %vm1716 = vcmp.eq.s32.totalorder %v491, %v1088
          %vm1717 = vcmp.eq.s32.totalorder %v491, %v1092
          %vm1718 = vcmp.eq.s32.totalorder %v491, %v1096
          %vm1719 = vcmp.eq.s32.totalorder %v491, %v1100
          %vm1720 = vcmp.eq.s32.totalorder %v491, %v1104
          %vm1721 = vcmp.eq.s32.totalorder %v491, %v1108
          %vm1722 = vcmp.eq.s32.totalorder %v491, %v1115
          %vm1723 = vcmp.eq.s32.totalorder %v491, %v1119
          %vm1724 = vcmp.eq.s32.totalorder %v491, %v1123
          %vm1725 = vcmp.eq.s32.totalorder %v491, %v1127
          %vm1726 = vcmp.eq.s32.totalorder %v491, %v1131
          %vm1727 = vcmp.eq.s32.totalorder %v491, %v1135
          %vm1728 = vcmp.eq.s32.totalorder %v491, %v1139
          %vm1729 = vcmp.eq.s32.totalorder %v491, %v1143
          %vm1730 = vcmp.eq.s32.totalorder %v491, %v1147
          %vm1731 = vcmp.eq.s32.totalorder %v491, %v1151
          %vm1732 = vcmp.eq.s32.totalorder %v491, %v1155
          %vm1733 = vcmp.eq.s32.totalorder %v491, %v1159
          %vm1734 = vcmp.eq.s32.totalorder %v491, %v1163
          %vm1735 = vcmp.eq.s32.totalorder %v491, %v1167
          %vm1736 = vcmp.eq.s32.totalorder %v491, %v1171
          %vm1737 = vcmp.eq.s32.totalorder %v491, %v1175
          %vm1738 = vcmp.eq.s32.totalorder %v491, %v1182
          %vm1739 = vcmp.eq.s32.totalorder %v491, %v1186
          %vm1740 = vcmp.eq.s32.totalorder %v491, %v1190
          %vm1741 = vcmp.eq.s32.totalorder %v491, %v1194
          %vm1742 = vcmp.eq.s32.totalorder %v491, %v1198
          %vm1743 = vcmp.eq.s32.totalorder %v491, %v1202
          %vm1744 = vcmp.eq.s32.totalorder %v491, %v1206
          %vm1745 = vcmp.eq.s32.totalorder %v491, %v1210
          %vm1746 = vcmp.eq.s32.totalorder %v491, %v1214
          %vm1747 = vcmp.eq.s32.totalorder %v491, %v1218
          %vm1748 = vcmp.eq.s32.totalorder %v491, %v1222
          %vm1749 = vcmp.eq.s32.totalorder %v491, %v1226
          %vm1750 = vcmp.eq.s32.totalorder %v491, %v1230
          %vm1751 = vcmp.eq.s32.totalorder %v491, %v1234
          %vm1752 = vcmp.eq.s32.totalorder %v491, %v1238
          %vm1753 = vcmp.eq.s32.totalorder %v491, %v1242
          %vm1754 = vcmp.eq.s32.totalorder %v491, %v1249
          %vm1755 = vcmp.eq.s32.totalorder %v491, %v1253
          %vm1756 = vcmp.eq.s32.totalorder %v491, %v1257
          %vm1757 = vcmp.eq.s32.totalorder %v491, %v1261
          %vm1758 = vcmp.eq.s32.totalorder %v491, %v1265
          %vm1759 = vcmp.eq.s32.totalorder %v491, %v1269
          %vm1760 = vcmp.eq.s32.totalorder %v491, %v1273
          %vm1761 = vcmp.eq.s32.totalorder %v491, %v1277
          %vm1762 = vcmp.eq.s32.totalorder %v491, %v1281
          %vm1763 = vcmp.eq.s32.totalorder %v491, %v1285
          %vm1764 = vcmp.eq.s32.totalorder %v491, %v1289
          %vm1765 = vcmp.eq.s32.totalorder %v491, %v1293
          %vm1766 = vcmp.eq.s32.totalorder %v491, %v1297
          %vm1767 = vcmp.eq.s32.totalorder %v491, %v1301
          %vm1768 = vcmp.eq.s32.totalorder %v491, %v1305
          %vm1769 = vcmp.eq.s32.totalorder %v491, %v1309
          %vm1770 = vcmp.eq.s32.totalorder %v491, %v1316
          %vm1771 = vcmp.eq.s32.totalorder %v491, %v1320
          %vm1772 = vcmp.eq.s32.totalorder %v491, %v1324
          %vm1773 = vcmp.eq.s32.totalorder %v491, %v1328
          %vm1774 = vcmp.eq.s32.totalorder %v491, %v1332
          %vm1775 = vcmp.eq.s32.totalorder %v491, %v1336
          %vm1776 = vcmp.eq.s32.totalorder %v491, %v1340
          %vm1777 = vcmp.eq.s32.totalorder %v491, %v1344
          %vm1778 = vcmp.eq.s32.totalorder %v491, %v1348
          %vm1779 = vcmp.eq.s32.totalorder %v491, %v1352
          %vm1780 = vcmp.eq.s32.totalorder %v491, %v1356
          %vm1781 = vcmp.eq.s32.totalorder %v491, %v1360
          %vm1782 = vcmp.eq.s32.totalorder %v491, %v1364
          %vm1783 = vcmp.eq.s32.totalorder %v491, %v1368
          %vm1784 = vcmp.eq.s32.totalorder %v491, %v1372
          %vm1785 = vcmp.eq.s32.totalorder %v491, %v1376
          %vm1786 = vcmp.eq.s32.totalorder %v491, %v1383
          %vm1787 = vcmp.eq.s32.totalorder %v491, %v1387
          %vm1788 = vcmp.eq.s32.totalorder %v491, %v1391
          %vm1789 = vcmp.eq.s32.totalorder %v491, %v1395
          %vm1790 = vcmp.eq.s32.totalorder %v491, %v1399
          %vm1791 = vcmp.eq.s32.totalorder %v491, %v1403
          %vm1792 = vcmp.eq.s32.totalorder %v491, %v1407
          %vm1793 = vcmp.eq.s32.totalorder %v491, %v1411
          %vm1794 = vcmp.eq.s32.totalorder %v491, %v1415
          %vm1795 = vcmp.eq.s32.totalorder %v491, %v1419
          %vm1796 = vcmp.eq.s32.totalorder %v491, %v1423
          %vm1797 = vcmp.eq.s32.totalorder %v491, %v1427
          %vm1798 = vcmp.eq.s32.totalorder %v491, %v1431
          %vm1799 = vcmp.eq.s32.totalorder %v491, %v1435
          %vm1800 = vcmp.eq.s32.totalorder %v491, %v1439
          %vm1801 = vcmp.eq.s32.totalorder %v491, %v1443
          %vm1802 = vcmp.eq.s32.totalorder %v491, %v1450
          %vm1803 = vcmp.eq.s32.totalorder %v491, %v1454
          %vm1804 = vcmp.eq.s32.totalorder %v491, %v1458
          %vm1805 = vcmp.eq.s32.totalorder %v491, %v1462
          %vm1806 = vcmp.eq.s32.totalorder %v491, %v1466
          %vm1807 = vcmp.eq.s32.totalorder %v491, %v1470
          %vm1808 = vcmp.eq.s32.totalorder %v491, %v1474
          %vm1809 = vcmp.eq.s32.totalorder %v491, %v1478
          %vm1810 = vcmp.eq.s32.totalorder %v491, %v1482
          %vm1811 = vcmp.eq.s32.totalorder %v491, %v1486
          %vm1812 = vcmp.eq.s32.totalorder %v491, %v1490
          %vm1813 = vcmp.eq.s32.totalorder %v491, %v1494
          %vm1814 = vcmp.eq.s32.totalorder %v491, %v1498
          %vm1815 = vcmp.eq.s32.totalorder %v491, %v1502
          %vm1816 = vcmp.eq.s32.totalorder %v491, %v1506
          %vm1817 = vcmp.eq.s32.totalorder %v491, %v1510
          %vm1818 = vcmp.eq.s32.totalorder %v491, %v1517
          %vm1819 = vcmp.eq.s32.totalorder %v491, %v1521
          %vm1820 = vcmp.eq.s32.totalorder %v491, %v1525
          %vm1821 = vcmp.eq.s32.totalorder %v491, %v1529
          %vm1822 = vcmp.eq.s32.totalorder %v491, %v1533
          %vm1823 = vcmp.eq.s32.totalorder %v491, %v1537
          %vm1824 = vcmp.eq.s32.totalorder %v491, %v1541
          %vm1825 = vcmp.eq.s32.totalorder %v491, %v1545
          %vm1826 = vcmp.eq.s32.totalorder %v491, %v1549
          %vm1827 = vcmp.eq.s32.totalorder %v491, %v1553
          %vm1828 = vcmp.eq.s32.totalorder %v491, %v1557
          %vm1829 = vcmp.eq.s32.totalorder %v491, %v1561
          %vm1830 = vcmp.eq.s32.totalorder %v491, %v1565
          %vm1831 = vcmp.eq.s32.totalorder %v491, %v1569
          %vm1832 = vcmp.eq.s32.totalorder %v491, %v1573
          %vm1833 = vcmp.eq.s32.totalorder %v491, %v1577
          %v1834 = vsel %vm1578, 1, 0
          %v1835 = vsel %vm1579, 1, 0
          %v1836 = vsel %vm1580, 1, 0
          %v1837 = vsel %vm1581, 1, 0
          %v1838 = vsel %vm1582, 1, 0
          %v1839 = vsel %vm1583, 1, 0
          %v1840 = vsel %vm1584, 1, 0
          %v1841 = vsel %vm1585, 1, 0
          %v1842 = vsel %vm1586, 1, 0
          %v1843 = vsel %vm1587, 1, 0
          %v1844 = vsel %vm1588, 1, 0
          %v1845 = vsel %vm1589, 1, 0
          %v1846 = vsel %vm1590, 1, 0
          %v1847 = vsel %vm1591, 1, 0
          %v1848 = vsel %vm1592, 1, 0
          %v1849 = vsel %vm1593, 1, 0
          %v1850 = vsel %vm1594, 1, 0
          %v1851 = vsel %vm1595, 1, 0
          %v1852 = vsel %vm1596, 1, 0
          %v1853 = vsel %vm1597, 1, 0
          %v1854 = vsel %vm1598, 1, 0
          %v1855 = vsel %vm1599, 1, 0
          %v1856 = vsel %vm1600, 1, 0
          %v1857 = vsel %vm1601, 1, 0
          %v1858 = vsel %vm1602, 1, 0
          %v1859 = vsel %vm1603, 1, 0
          %v1860 = vsel %vm1604, 1, 0
          %v1861 = vsel %vm1605, 1, 0
          %v1862 = vsel %vm1606, 1, 0
          %v1863 = vsel %vm1607, 1, 0
          %v1864 = vsel %vm1608, 1, 0
          %v1865 = vsel %vm1609, 1, 0
          %v1866 = vsel %vm1610, 1, 0
          %v1867 = vsel %vm1611, 1, 0
          %v1868 = vsel %vm1612, 1, 0
          %v1869 = vsel %vm1613, 1, 0
          %v1870 = vsel %vm1614, 1, 0
          %v1871 = vsel %vm1615, 1, 0
          %v1872 = vsel %vm1616, 1, 0
          %v1873 = vsel %vm1617, 1, 0
          %v1874 = vsel %vm1618, 1, 0
          %v1875 = vsel %vm1619, 1, 0
          %v1876 = vsel %vm1620, 1, 0
          %v1877 = vsel %vm1621, 1, 0
          %v1878 = vsel %vm1622, 1, 0
          %v1879 = vsel %vm1623, 1, 0
          %v1880 = vsel %vm1624, 1, 0
          %v1881 = vsel %vm1625, 1, 0
          %v1882 = vsel %vm1626, 1, 0
          %v1883 = vsel %vm1627, 1, 0
          %v1884 = vsel %vm1628, 1, 0
          %v1885 = vsel %vm1629, 1, 0
          %v1886 = vsel %vm1630, 1, 0
          %v1887 = vsel %vm1631, 1, 0
          %v1888 = vsel %vm1632, 1, 0
          %v1889 = vsel %vm1633, 1, 0
          %v1890 = vsel %vm1634, 1, 0
          %v1891 = vsel %vm1635, 1, 0
          %v1892 = vsel %vm1636, 1, 0
          %v1893 = vsel %vm1637, 1, 0
          %v1894 = vsel %vm1638, 1, 0
          %v1895 = vsel %vm1639, 1, 0
          %v1896 = vsel %vm1640, 1, 0
          %v1897 = vsel %vm1641, 1, 0
          %v1898 = vsel %vm1642, 1, 0
          %v1899 = vsel %vm1643, 1, 0
          %v1900 = vsel %vm1644, 1, 0
          %v1901 = vsel %vm1645, 1, 0
          %v1902 = vsel %vm1646, 1, 0
          %v1903 = vsel %vm1647, 1, 0
          %v1904 = vsel %vm1648, 1, 0
          %v1905 = vsel %vm1649, 1, 0
          %v1906 = vsel %vm1650, 1, 0
          %v1907 = vsel %vm1651, 1, 0
          %v1908 = vsel %vm1652, 1, 0
          %v1909 = vsel %vm1653, 1, 0
          %v1910 = vsel %vm1654, 1, 0
          %v1911 = vsel %vm1655, 1, 0
          %v1912 = vsel %vm1656, 1, 0
          %v1913 = vsel %vm1657, 1, 0
          %v1914 = vsel %vm1658, 1, 0
          %v1915 = vsel %vm1659, 1, 0
          %v1916 = vsel %vm1660, 1, 0
          %v1917 = vsel %vm1661, 1, 0
          %v1918 = vsel %vm1662, 1, 0
          %v1919 = vsel %vm1663, 1, 0
          %v1920 = vsel %vm1664, 1, 0
          %v1921 = vsel %vm1665, 1, 0
          %v1922 = vsel %vm1666, 1, 0
          %v1923 = vsel %vm1667, 1, 0
          %v1924 = vsel %vm1668, 1, 0
          %v1925 = vsel %vm1669, 1, 0
          %v1926 = vsel %vm1670, 1, 0
          %v1927 = vsel %vm1671, 1, 0
          %v1928 = vsel %vm1672, 1, 0
          %v1929 = vsel %vm1673, 1, 0
          %v1930 = vsel %vm1674, 1, 0
          %v1931 = vsel %vm1675, 1, 0
          %v1932 = vsel %vm1676, 1, 0
          %v1933 = vsel %vm1677, 1, 0
          %v1934 = vsel %vm1678, 1, 0
          %v1935 = vsel %vm1679, 1, 0
          %v1936 = vsel %vm1680, 1, 0
          %v1937 = vsel %vm1681, 1, 0
          %v1938 = vsel %vm1682, 1, 0
          %v1939 = vsel %vm1683, 1, 0
          %v1940 = vsel %vm1684, 1, 0
          %v1941 = vsel %vm1685, 1, 0
          %v1942 = vsel %vm1686, 1, 0
          %v1943 = vsel %vm1687, 1, 0
          %v1944 = vsel %vm1688, 1, 0
          %v1945 = vsel %vm1689, 1, 0
          %v1946 = vsel %vm1690, 1, 0
          %v1947 = vsel %vm1691, 1, 0
          %v1948 = vsel %vm1692, 1, 0
          %v1949 = vsel %vm1693, 1, 0
          %v1950 = vsel %vm1694, 1, 0
          %v1951 = vsel %vm1695, 1, 0
          %v1952 = vsel %vm1696, 1, 0
          %v1953 = vsel %vm1697, 1, 0
          %v1954 = vsel %vm1698, 1, 0
          %v1955 = vsel %vm1699, 1, 0
          %v1956 = vsel %vm1700, 1, 0
          %v1957 = vsel %vm1701, 1, 0
          %v1958 = vsel %vm1702, 1, 0
          %v1959 = vsel %vm1703, 1, 0
          %v1960 = vsel %vm1704, 1, 0
          %v1961 = vsel %vm1705, 1, 0
          %v1962 = vsel %vm1706, 1, 0
          %v1963 = vsel %vm1707, 1, 0
          %v1964 = vsel %vm1708, 1, 0
          %v1965 = vsel %vm1709, 1, 0
          %v1966 = vsel %vm1710, 1, 0
          %v1967 = vsel %vm1711, 1, 0
          %v1968 = vsel %vm1712, 1, 0
          %v1969 = vsel %vm1713, 1, 0
          %v1970 = vsel %vm1714, 1, 0
          %v1971 = vsel %vm1715, 1, 0
          %v1972 = vsel %vm1716, 1, 0
          %v1973 = vsel %vm1717, 1, 0
          %v1974 = vsel %vm1718, 1, 0
          %v1975 = vsel %vm1719, 1, 0
          %v1976 = vsel %vm1720, 1, 0
          %v1977 = vsel %vm1721, 1, 0
          %v1978 = vsel %vm1722, 1, 0
          %v1979 = vsel %vm1723, 1, 0
          %v1980 = vsel %vm1724, 1, 0
          %v1981 = vsel %vm1725, 1, 0
          %v1982 = vsel %vm1726, 1, 0
          %v1983 = vsel %vm1727, 1, 0
          %v1984 = vsel %vm1728, 1, 0
          %v1985 = vsel %vm1729, 1, 0
          %v1986 = vsel %vm1730, 1, 0
          %v1987 = vsel %vm1731, 1, 0
          %v1988 = vsel %vm1732, 1, 0
          %v1989 = vsel %vm1733, 1, 0
          %v1990 = vsel %vm1734, 1, 0
          %v1991 = vsel %vm1735, 1, 0
          %v1992 = vsel %vm1736, 1, 0
          %v1993 = vsel %vm1737, 1, 0
          %v1994 = vsel %vm1738, 1, 0
          %v1995 = vsel %vm1739, 1, 0
          %v1996 = vsel %vm1740, 1, 0
          %v1997 = vsel %vm1741, 1, 0
          %v1998 = vsel %vm1742, 1, 0
          %v1999 = vsel %vm1743, 1, 0
          %v2000 = vsel %vm1744, 1, 0
          %v2001 = vsel %vm1745, 1, 0
          %v2002 = vsel %vm1746, 1, 0
          %v2003 = vsel %vm1747, 1, 0
          %v2004 = vsel %vm1748, 1, 0
          %v2005 = vsel %vm1749, 1, 0
          %v2006 = vsel %vm1750, 1, 0
          %v2007 = vsel %vm1751, 1, 0
          %v2008 = vsel %vm1752, 1, 0
          %v2009 = vsel %vm1753, 1, 0
          %v2010 = vsel %vm1754, 1, 0
          %v2011 = vsel %vm1755, 1, 0
          %v2012 = vsel %vm1756, 1, 0
          %v2013 = vsel %vm1757, 1, 0
          %v2014 = vsel %vm1758, 1, 0
          %v2015 = vsel %vm1759, 1, 0
          %v2016 = vsel %vm1760, 1, 0
          %v2017 = vsel %vm1761, 1, 0
          %v2018 = vsel %vm1762, 1, 0
          %v2019 = vsel %vm1763, 1, 0
          %v2020 = vsel %vm1764, 1, 0
          %v2021 = vsel %vm1765, 1, 0
          %v2022 = vsel %vm1766, 1, 0
          %v2023 = vsel %vm1767, 1, 0
          %v2024 = vsel %vm1768, 1, 0
          %v2025 = vsel %vm1769, 1, 0
          %v2026 = vsel %vm1770, 1, 0
          %v2027 = vsel %vm1771, 1, 0
          %v2028 = vsel %vm1772, 1, 0
          %v2029 = vsel %vm1773, 1, 0
          %v2030 = vsel %vm1774, 1, 0
          %v2031 = vsel %vm1775, 1, 0
          %v2032 = vsel %vm1776, 1, 0
          %v2033 = vsel %vm1777, 1, 0
          %v2034 = vsel %vm1778, 1, 0
          %v2035 = vsel %vm1779, 1, 0
          %v2036 = vsel %vm1780, 1, 0
          %v2037 = vsel %vm1781, 1, 0
          %v2038 = vsel %vm1782, 1, 0
          %v2039 = vsel %vm1783, 1, 0
          %v2040 = vsel %vm1784, 1, 0
          %v2041 = vsel %vm1785, 1, 0
          %v2042 = vsel %vm1786, 1, 0
          %v2043 = vsel %vm1787, 1, 0
          %v2044 = vsel %vm1788, 1, 0
          %v2045 = vsel %vm1789, 1, 0
          %v2046 = vsel %vm1790, 1, 0
          %v2047 = vsel %vm1791, 1, 0
          %v2048 = vsel %vm1792, 1, 0
          %v2049 = vsel %vm1793, 1, 0
          %v2050 = vsel %vm1794, 1, 0
          %v2051 = vsel %vm1795, 1, 0
          %v2052 = vsel %vm1796, 1, 0
          %v2053 = vsel %vm1797, 1, 0
          %v2054 = vsel %vm1798, 1, 0
          %v2055 = vsel %vm1799, 1, 0
          %v2056 = vsel %vm1800, 1, 0
          %v2057 = vsel %vm1801, 1, 0
          %v2058 = vsel %vm1802, 1, 0
          %v2059 = vsel %vm1803, 1, 0
          %v2060 = vsel %vm1804, 1, 0
          %v2061 = vsel %vm1805, 1, 0
          %v2062 = vsel %vm1806, 1, 0
          %v2063 = vsel %vm1807, 1, 0
          %v2064 = vsel %vm1808, 1, 0
          %v2065 = vsel %vm1809, 1, 0
          %v2066 = vsel %vm1810, 1, 0
          %v2067 = vsel %vm1811, 1, 0
          %v2068 = vsel %vm1812, 1, 0
          %v2069 = vsel %vm1813, 1, 0
          %v2070 = vsel %vm1814, 1, 0
          %v2071 = vsel %vm1815, 1, 0
          %v2072 = vsel %vm1816, 1, 0
          %v2073 = vsel %vm1817, 1, 0
          %v2074 = vsel %vm1818, 1, 0
          %v2075 = vsel %vm1819, 1, 0
          %v2076 = vsel %vm1820, 1, 0
          %v2077 = vsel %vm1821, 1, 0
          %v2078 = vsel %vm1822, 1, 0
          %v2079 = vsel %vm1823, 1, 0
          %v2080 = vsel %vm1824, 1, 0
          %v2081 = vsel %vm1825, 1, 0
          %v2082 = vsel %vm1826, 1, 0
          %v2083 = vsel %vm1827, 1, 0
          %v2084 = vsel %vm1828, 1, 0
          %v2085 = vsel %vm1829, 1, 0
          %v2086 = vsel %vm1830, 1, 0
          %v2087 = vsel %vm1831, 1, 0
          %v2088 = vsel %vm1832, 1, 0
          %v2089 = vsel %vm1833, 1, 0
          %v2090 = vadd.s32 %v1834, %v1835
          %v2091 = vadd.s32 %v2090, %v1836
          %v2092 = vadd.s32 %v2091, %v1837
          %v2093 = vadd.s32 %v2092, %v1838
          %v2094 = vadd.s32 %v2093, %v1839
          %v2095 = vadd.s32 %v2094, %v1840
          %v2096 = vadd.s32 %v2095, %v1841
          %v2097 = vadd.s32 %v2096, %v1842
          %v2098 = vadd.s32 %v2097, %v1843
          %v2099 = vadd.s32 %v2098, %v1844
          %v2100 = vadd.s32 %v2099, %v1845
          %v2101 = vadd.s32 %v2100, %v1846
          %v2102 = vadd.s32 %v2101, %v1847
          %v2103 = vadd.s32 %v2102, %v1848
          %v2104 = vadd.s32 %v2103, %v1849
          %v2105 = vadd.s32 %v2104, %v1850
          %v2106 = vadd.s32 %v2105, %v1851
          %v2107 = vadd.s32 %v2106, %v1852
          %v2108 = vadd.s32 %v2107, %v1853
          %v2109 = vadd.s32 %v2108, %v1854
          %v2110 = vadd.s32 %v2109, %v1855
          %v2111 = vadd.s32 %v2110, %v1856
          %v2112 = vadd.s32 %v2111, %v1857
          %v2113 = vadd.s32 %v2112, %v1858
          %v2114 = vadd.s32 %v2113, %v1859
          %v2115 = vadd.s32 %v2114, %v1860
          %v2116 = vadd.s32 %v2115, %v1861
          %v2117 = vadd.s32 %v2116, %v1862
          %v2118 = vadd.s32 %v2117, %v1863
          %v2119 = vadd.s32 %v2118, %v1864
          %v2120 = vadd.s32 %v2119, %v1865
          %v2121 = vrot.slane %v2120, 4
          %v2122 = vadd.s32 %v2120, %v2121
          %v2123 = vrot.slane %v2122, 2
          %v2124 = vadd.s32 %v2122, %v2123
          %v2125 = vrot.slane %v2124, 1
          %v2126 = vadd.s32 %v2124, %v2125
          %v2127 = vadd.s32 %v1866, %v1867
          %v2128 = vadd.s32 %v2127, %v1868
          %v2129 = vadd.s32 %v2128, %v1869
          %v2130 = vadd.s32 %v2129, %v1870
          %v2131 = vadd.s32 %v2130, %v1871
          %v2132 = vadd.s32 %v2131, %v1872
          %v2133 = vadd.s32 %v2132, %v1873
          %v2134 = vadd.s32 %v2133, %v1874
          %v2135 = vadd.s32 %v2134, %v1875
          %v2136 = vadd.s32 %v2135, %v1876
          %v2137 = vadd.s32 %v2136, %v1877
          %v2138 = vadd.s32 %v2137, %v1878
          %v2139 = vadd.s32 %v2138, %v1879
          %v2140 = vadd.s32 %v2139, %v1880
          %v2141 = vadd.s32 %v2140, %v1881
          %v2142 = vadd.s32 %v2141, %v1882
          %v2143 = vadd.s32 %v2142, %v1883
          %v2144 = vadd.s32 %v2143, %v1884
          %v2145 = vadd.s32 %v2144, %v1885
          %v2146 = vadd.s32 %v2145, %v1886
          %v2147 = vadd.s32 %v2146, %v1887
          %v2148 = vadd.s32 %v2147, %v1888
          %v2149 = vadd.s32 %v2148, %v1889
          %v2150 = vadd.s32 %v2149, %v1890
          %v2151 = vadd.s32 %v2150, %v1891
          %v2152 = vadd.s32 %v2151, %v1892
          %v2153 = vadd.s32 %v2152, %v1893
          %v2154 = vadd.s32 %v2153, %v1894
          %v2155 = vadd.s32 %v2154, %v1895
          %v2156 = vadd.s32 %v2155, %v1896
          %v2157 = vadd.s32 %v2156, %v1897
          %v2158 = vrot.slane %v2157, 4
          %v2159 = vadd.s32 %v2157, %v2158
          %v2160 = vrot.slane %v2159, 2
          %v2161 = vadd.s32 %v2159, %v2160
          %v2162 = vrot.slane %v2161, 1
          %v2163 = vadd.s32 %v2161, %v2162
          %v2164 = vadd.s32 %v1898, %v1899
          %v2165 = vadd.s32 %v2164, %v1900
          %v2166 = vadd.s32 %v2165, %v1901
          %v2167 = vadd.s32 %v2166, %v1902
          %v2168 = vadd.s32 %v2167, %v1903
          %v2169 = vadd.s32 %v2168, %v1904
          %v2170 = vadd.s32 %v2169, %v1905
          %v2171 = vadd.s32 %v2170, %v1906
          %v2172 = vadd.s32 %v2171, %v1907
          %v2173 = vadd.s32 %v2172, %v1908
          %v2174 = vadd.s32 %v2173, %v1909
          %v2175 = vadd.s32 %v2174, %v1910
          %v2176 = vadd.s32 %v2175, %v1911
          %v2177 = vadd.s32 %v2176, %v1912
          %v2178 = vadd.s32 %v2177, %v1913
          %v2179 = vadd.s32 %v2178, %v1914
          %v2180 = vadd.s32 %v2179, %v1915
          %v2181 = vadd.s32 %v2180, %v1916
          %v2182 = vadd.s32 %v2181, %v1917
          %v2183 = vadd.s32 %v2182, %v1918
          %v2184 = vadd.s32 %v2183, %v1919
          %v2185 = vadd.s32 %v2184, %v1920
          %v2186 = vadd.s32 %v2185, %v1921
          %v2187 = vadd.s32 %v2186, %v1922
          %v2188 = vadd.s32 %v2187, %v1923
          %v2189 = vadd.s32 %v2188, %v1924
          %v2190 = vadd.s32 %v2189, %v1925
          %v2191 = vadd.s32 %v2190, %v1926
          %v2192 = vadd.s32 %v2191, %v1927
          %v2193 = vadd.s32 %v2192, %v1928
          %v2194 = vadd.s32 %v2193, %v1929
          %v2195 = vrot.slane %v2194, 4
          %v2196 = vadd.s32 %v2194, %v2195
          %v2197 = vrot.slane %v2196, 2
          %v2198 = vadd.s32 %v2196, %v2197
          %v2199 = vrot.slane %v2198, 1
          %v2200 = vadd.s32 %v2198, %v2199
          %v2201 = vadd.s32 %v1930, %v1931
          %v2202 = vadd.s32 %v2201, %v1932
          %v2203 = vadd.s32 %v2202, %v1933
          %v2204 = vadd.s32 %v2203, %v1934
          %v2205 = vadd.s32 %v2204, %v1935
          %v2206 = vadd.s32 %v2205, %v1936
          %v2207 = vadd.s32 %v2206, %v1937
          %v2208 = vadd.s32 %v2207, %v1938
          %v2209 = vadd.s32 %v2208, %v1939
          %v2210 = vadd.s32 %v2209, %v1940
          %v2211 = vadd.s32 %v2210, %v1941
          %v2212 = vadd.s32 %v2211, %v1942
          %v2213 = vadd.s32 %v2212, %v1943
          %v2214 = vadd.s32 %v2213, %v1944
          %v2215 = vadd.s32 %v2214, %v1945
          %v2216 = vadd.s32 %v2215, %v1946
          %v2217 = vadd.s32 %v2216, %v1947
          %v2218 = vadd.s32 %v2217, %v1948
          %v2219 = vadd.s32 %v2218, %v1949
          %v2220 = vadd.s32 %v2219, %v1950
          %v2221 = vadd.s32 %v2220, %v1951
          %v2222 = vadd.s32 %v2221, %v1952
          %v2223 = vadd.s32 %v2222, %v1953
          %v2224 = vadd.s32 %v2223, %v1954
          %v2225 = vadd.s32 %v2224, %v1955
          %v2226 = vadd.s32 %v2225, %v1956
          %v2227 = vadd.s32 %v2226, %v1957
          %v2228 = vadd.s32 %v2227, %v1958
          %v2229 = vadd.s32 %v2228, %v1959
          %v2230 = vadd.s32 %v2229, %v1960
          %v2231 = vadd.s32 %v2230, %v1961
          %v2232 = vrot.slane %v2231, 4
          %v2233 = vadd.s32 %v2231, %v2232
          %v2234 = vrot.slane %v2233, 2
          %v2235 = vadd.s32 %v2233, %v2234
          %v2236 = vrot.slane %v2235, 1
          %v2237 = vadd.s32 %v2235, %v2236
          %v2238 = vadd.s32 %v1962, %v1963
          %v2239 = vadd.s32 %v2238, %v1964
          %v2240 = vadd.s32 %v2239, %v1965
          %v2241 = vadd.s32 %v2240, %v1966
          %v2242 = vadd.s32 %v2241, %v1967
          %v2243 = vadd.s32 %v2242, %v1968
          %v2244 = vadd.s32 %v2243, %v1969
          %v2245 = vadd.s32 %v2244, %v1970
          %v2246 = vadd.s32 %v2245, %v1971
          %v2247 = vadd.s32 %v2246, %v1972
          %v2248 = vadd.s32 %v2247, %v1973
          %v2249 = vadd.s32 %v2248, %v1974
          %v2250 = vadd.s32 %v2249, %v1975
          %v2251 = vadd.s32 %v2250, %v1976
          %v2252 = vadd.s32 %v2251, %v1977
          %v2253 = vadd.s32 %v2252, %v1978
          %v2254 = vadd.s32 %v2253, %v1979
          %v2255 = vadd.s32 %v2254, %v1980
          %v2256 = vadd.s32 %v2255, %v1981
          %v2257 = vadd.s32 %v2256, %v1982
          %v2258 = vadd.s32 %v2257, %v1983
          %v2259 = vadd.s32 %v2258, %v1984
          %v2260 = vadd.s32 %v2259, %v1985
          %v2261 = vadd.s32 %v2260, %v1986
          %v2262 = vadd.s32 %v2261, %v1987
          %v2263 = vadd.s32 %v2262, %v1988
          %v2264 = vadd.s32 %v2263, %v1989
          %v2265 = vadd.s32 %v2264, %v1990
          %v2266 = vadd.s32 %v2265, %v1991
          %v2267 = vadd.s32 %v2266, %v1992
          %v2268 = vadd.s32 %v2267, %v1993
          %v2269 = vrot.slane %v2268, 4
          %v2270 = vadd.s32 %v2268, %v2269
          %v2271 = vrot.slane %v2270, 2
          %v2272 = vadd.s32 %v2270, %v2271
          %v2273 = vrot.slane %v2272, 1
          %v2274 = vadd.s32 %v2272, %v2273
          %v2275 = vadd.s32 %v1994, %v1995
          %v2276 = vadd.s32 %v2275, %v1996
          %v2277 = vadd.s32 %v2276, %v1997
          %v2278 = vadd.s32 %v2277, %v1998
          %v2279 = vadd.s32 %v2278, %v1999
          %v2280 = vadd.s32 %v2279, %v2000
          %v2281 = vadd.s32 %v2280, %v2001
          %v2282 = vadd.s32 %v2281, %v2002
          %v2283 = vadd.s32 %v2282, %v2003
          %v2284 = vadd.s32 %v2283, %v2004
          %v2285 = vadd.s32 %v2284, %v2005
          %v2286 = vadd.s32 %v2285, %v2006
          %v2287 = vadd.s32 %v2286, %v2007
          %v2288 = vadd.s32 %v2287, %v2008
          %v2289 = vadd.s32 %v2288, %v2009
          %v2290 = vadd.s32 %v2289, %v2010
          %v2291 = vadd.s32 %v2290, %v2011
          %v2292 = vadd.s32 %v2291, %v2012
          %v2293 = vadd.s32 %v2292, %v2013
          %v2294 = vadd.s32 %v2293, %v2014
          %v2295 = vadd.s32 %v2294, %v2015
          %v2296 = vadd.s32 %v2295, %v2016
          %v2297 = vadd.s32 %v2296, %v2017
          %v2298 = vadd.s32 %v2297, %v2018
          %v2299 = vadd.s32 %v2298, %v2019
          %v2300 = vadd.s32 %v2299, %v2020
          %v2301 = vadd.s32 %v2300, %v2021
          %v2302 = vadd.s32 %v2301, %v2022
          %v2303 = vadd.s32 %v2302, %v2023
          %v2304 = vadd.s32 %v2303, %v2024
          %v2305 = vadd.s32 %v2304, %v2025
          %v2306 = vrot.slane %v2305, 4
          %v2307 = vadd.s32 %v2305, %v2306
          %v2308 = vrot.slane %v2307, 2
          %v2309 = vadd.s32 %v2307, %v2308
          %v2310 = vrot.slane %v2309, 1
          %v2311 = vadd.s32 %v2309, %v2310
          %v2312 = vadd.s32 %v2026, %v2027
          %v2313 = vadd.s32 %v2312, %v2028
          %v2314 = vadd.s32 %v2313, %v2029
          %v2315 = vadd.s32 %v2314, %v2030
          %v2316 = vadd.s32 %v2315, %v2031
          %v2317 = vadd.s32 %v2316, %v2032
          %v2318 = vadd.s32 %v2317, %v2033
          %v2319 = vadd.s32 %v2318, %v2034
          %v2320 = vadd.s32 %v2319, %v2035
          %v2321 = vadd.s32 %v2320, %v2036
          %v2322 = vadd.s32 %v2321, %v2037
          %v2323 = vadd.s32 %v2322, %v2038
          %v2324 = vadd.s32 %v2323, %v2039
          %v2325 = vadd.s32 %v2324, %v2040
          %v2326 = vadd.s32 %v2325, %v2041
          %v2327 = vadd.s32 %v2326, %v2042
          %v2328 = vadd.s32 %v2327, %v2043
          %v2329 = vadd.s32 %v2328, %v2044
          %v2330 = vadd.s32 %v2329, %v2045
          %v2331 = vadd.s32 %v2330, %v2046
          %v2332 = vadd.s32 %v2331, %v2047
          %v2333 = vadd.s32 %v2332, %v2048
          %v2334 = vadd.s32 %v2333, %v2049
          %v2335 = vadd.s32 %v2334, %v2050
          %v2336 = vadd.s32 %v2335, %v2051
          %v2337 = vadd.s32 %v2336, %v2052
          %v2338 = vadd.s32 %v2337, %v2053
          %v2339 = vadd.s32 %v2338, %v2054
          %v2340 = vadd.s32 %v2339, %v2055
          %v2341 = vadd.s32 %v2340, %v2056
          %v2342 = vadd.s32 %v2341, %v2057
          %v2343 = vrot.slane %v2342, 4
          %v2344 = vadd.s32 %v2342, %v2343
          %v2345 = vrot.slane %v2344, 2
          %v2346 = vadd.s32 %v2344, %v2345
          %v2347 = vrot.slane %v2346, 1
          %v2348 = vadd.s32 %v2346, %v2347
          %v2349 = vadd.s32 %v2058, %v2059
          %v2350 = vadd.s32 %v2349, %v2060
          %v2351 = vadd.s32 %v2350, %v2061
          %v2352 = vadd.s32 %v2351, %v2062
          %v2353 = vadd.s32 %v2352, %v2063
          %v2354 = vadd.s32 %v2353, %v2064
          %v2355 = vadd.s32 %v2354, %v2065
          %v2356 = vadd.s32 %v2355, %v2066
          %v2357 = vadd.s32 %v2356, %v2067
          %v2358 = vadd.s32 %v2357, %v2068
          %v2359 = vadd.s32 %v2358, %v2069
          %v2360 = vadd.s32 %v2359, %v2070
          %v2361 = vadd.s32 %v2360, %v2071
          %v2362 = vadd.s32 %v2361, %v2072
          %v2363 = vadd.s32 %v2362, %v2073
          %v2364 = vadd.s32 %v2363, %v2074
          %v2365 = vadd.s32 %v2364, %v2075
          %v2366 = vadd.s32 %v2365, %v2076
          %v2367 = vadd.s32 %v2366, %v2077
          %v2368 = vadd.s32 %v2367, %v2078
          %v2369 = vadd.s32 %v2368, %v2079
          %v2370 = vadd.s32 %v2369, %v2080
          %v2371 = vadd.s32 %v2370, %v2081
          %v2372 = vadd.s32 %v2371, %v2082
          %v2373 = vadd.s32 %v2372, %v2083
          %v2374 = vadd.s32 %v2373, %v2084
          %v2375 = vadd.s32 %v2374, %v2085
          %v2376 = vadd.s32 %v2375, %v2086
          %v2377 = vadd.s32 %v2376, %v2087
          %v2378 = vadd.s32 %v2377, %v2088
          %v2379 = vadd.s32 %v2378, %v2089
          %v2380 = vrot.slane %v2379, 4
          %v2381 = vadd.s32 %v2379, %v2380
          %v2382 = vrot.slane %v2381, 2
          %v2383 = vadd.s32 %v2381, %v2382
          %v2384 = vrot.slane %v2383, 1
          %v2385 = vadd.s32 %v2383, %v2384
          %vm2386 = vcmask 1041409
          %v2387 = vsel %vm2386, %v2163, %v2126
          %vm2388 = vcmask 1042434
          %v2389 = vsel %vm2388, %v2200, %v2387
          %vm2390 = vcmask 1043459
          %v2391 = vsel %vm2390, %v2237, %v2389
          %vm2392 = vcmask 1044484
          %v2393 = vsel %vm2392, %v2274, %v2391
          %vm2394 = vcmask 1045509
          %v2395 = vsel %vm2394, %v2311, %v2393
          %vm2396 = vcmask 1046534
          %v2397 = vsel %vm2396, %v2348, %v2395
          %vm2398 = vcmask 1047559
          %v2399 = vsel %vm2398, %v2385, %v2397
          %v2400 = vadd.s32 %v505, %v2399
          %2401 = vst [vmem:[#allocation2] sm:$0xff] %v2400
          %v2402 = vld [vmem:[%s414] sm:$0xff]
          %v2403 = vld [vmem:[%s414 + $0x8] sm:$0xff]
          %vm2404 = vcmp.eq.s32.totalorder %v2402, 1
          %vm2405 = vcmp.eq.s32.totalorder %v2403, 1
          %vm2406 = vmand %vm499, %vm2404
          %vm2407 = vmand %vm500, %vm2405
          %v2408 = vsel %vm2406, 1, 0
          %v2409 = vsel %vm2407, 1, 0
          %v2410 = vadd.s32 %v2408, %v2409
          %v2411 = vand.u32 %v2410, 65535
          %v2412 = vshrl.u32 %v2410, 16
          %v2413 = vcvt.s32.f32 %v2411
          %v2414 = vcvt.s32.f32 %v2412
          %2415 = vadd.xlane.f32.xlu0 %v2413
          %v2416 = vpop.xlane.xlu0 %2415
          %2417 = vadd.xlane.f32.xlu0 %v2414
          %v2418 = vpop.xlane.xlu0 %2417
          %v2419 = vcvt.f32.s32 %v2416
          %v2420 = vcvt.f32.s32 %v2418
          %v2421 = vshll.u32 %v2420, 16
          %v2422 = vadd.s32 %v2421, %v2419
          %v2423 = vld [vmem:[#allocation3] sm:$0xff]
          %v2424 = vadd.s32 %v2423, %v2422
          %vm2425 = vcmask 7168
          %2426 = vst.msk [vmem:[#allocation3] sm:$0xff] %vm2425, %v2424
        $region84: #{tpu_custom_call.1} parent=55 // pred_fallthru
          _
        // Predicated region
        $region85: #{tpu_custom_call.1} parent=55 // pred_check
          %p2427 = pneg %p476
        $region86: #{tpu_custom_call.1} parent=55 // pred_check_branch
          %2429 = sbr.rel (%p2427) target = $region88
        $region87: #{tpu_custom_call.1} parent=55 // pred_region
          %v2430 = vld [vmem:[%s475] sm:$0xff]
          %vm2431 = vcmp.gt.s32.totalorder %v2430, 1
          %v2432 = vsel %vm2431, %v2430, 1
          %v2433 = vcvt.s32.f32 %v2432
          %v2434 = vld [vmem:[#allocation2] sm:$0xff]
          %v2435 = vcvt.s32.f32 %v2434
          %v2436 = vld [vmem:[#allocation11] sm:$0xff]
          %v2437 = vld [vmem:[#allocation11 + $0x8] sm:$0xff]
          %v2438 = vld [vmem:[#allocation11 + $0x10] sm:$0xff]
          %v2439 = vld [vmem:[#allocation11 + $0x18] sm:$0xff]
          %v2440 = vld [vmem:[#allocation11 + $0x20] sm:$0xff]
          %v2441 = vld [vmem:[#allocation11 + $0x28] sm:$0xff]
          %v2442 = vld [vmem:[#allocation11 + $0x30] sm:$0xff]
          %v2443 = vld [vmem:[#allocation11 + $0x38] sm:$0xff]
          %v2444 = vld [vmem:[#allocation11 + $0x40] sm:$0xff]
          %v2445 = vld [vmem:[#allocation11 + $0x48] sm:$0xff]
          %v2446 = vld [vmem:[#allocation11 + $0x50] sm:$0xff]
          %v2447 = vld [vmem:[#allocation11 + $0x58] sm:$0xff]
          %v2448 = vld [vmem:[#allocation11 + $0x60] sm:$0xff]
          %v2449 = vld [vmem:[#allocation11 + $0x68] sm:$0xff]
          %v2450 = vld [vmem:[#allocation11 + $0x70] sm:$0xff]
          %v2451 = vld [vmem:[#allocation11 + $0x78] sm:$0xff]
          %v2452 = vld [vmem:[#allocation3] sm:$0xff]
          %v2453 = vsub.s32 %v2430, %v2452
          %v2454 = vcvt.s32.f32 %v2453
          %v2455 = vld [vmem:[%s7] sm:$0x1]
          %2457 = vset.pattern.permute.xlu0 0
          %2458 = vperm.xlu0 %2457, %v2454
          %v2459 = vpop.permute.xlu0 %2458
          %v2461 = vlaneseq
          %v2462 = vshrl.u32 %v2461, 7
          %v2463 = vsub.s32 0, %v2462
          %v2464 = vrot.slane %v2455, %v2463
          %v2465 = vmul.f32 %v2459, %v2464
          %v2466 = vcvt.s32.f32 %v2452
          %v2467 = vld [vmem:[%s7 + $0x1] sm:$0x1]
          %2469 = vset.pattern.permute.xlu0 0
          %2470 = vperm.xlu0 %2469, %v2466
          %v2471 = vpop.permute.xlu0 %2470
          %v2473 = vlaneseq
          %v2474 = vshrl.u32 %v2473, 7
          %v2475 = vsub.s32 0, %v2474
          %v2476 = vrot.slane %v2467, %v2475
          %v2477 = vmul.f32 %v2471, %v2476
          %v2478 = vadd.f32 %v2465, %v2477
          %2479 = vmatprep.subr.mxu0 0.0
          %2480 = vmatpush1.msra.mxu0 %v2451
          %2481 = vmatprep.subr.mxu0 0.0
          %2482 = vmatpush1.msra.mxu0 %v2450
          %2483 = vmatprep.subr.mxu0 0.0
          %2484 = vmatpush1.msra.mxu0 %v2449
          %2485 = vmatprep.subr.mxu0 0.0
          %2486 = vmatpush1.msra.mxu0 %v2448
          %2487 = vmatprep.subr.mxu0 0.0
          %2488 = vmatpush1.msra.mxu0 %v2447
          %2489 = vmatprep.subr.mxu0 0.0
          %2490 = vmatpush1.msra.mxu0 %v2446
          %2491 = vmatprep.subr.mxu0 0.0
          %2492 = vmatpush1.msra.mxu0 %v2445
          %2493 = vmatprep.subr.mxu0 0.0
          %2494 = vmatpush1.msra.mxu0 %v2444
          %2495 = vmatprep.subr.mxu0 0.0
          %2496 = vmatpush1.msra.mxu0 %v2443
          %2497 = vmatprep.subr.mxu0 0.0
          %2498 = vmatpush1.msra.mxu0 %v2442
          %2499 = vmatprep.subr.mxu0 0.0
          %2500 = vmatpush1.msra.mxu0 %v2441
          %2501 = vmatprep.subr.mxu0 0.0
          %2502 = vmatpush1.msra.mxu0 %v2440
          %2503 = vmatprep.subr.mxu0 0.0
          %2504 = vmatpush1.msra.mxu0 %v2439
          %2505 = vmatprep.subr.mxu0 0.0
          %2506 = vmatpush1.msra.mxu0 %v2438
          %2507 = vmatprep.subr.mxu0 0.0
          %2508 = vmatpush1.msra.mxu0 %v2437
          %2509 = vmatprep.subr.mxu0 0.0
          %2510 = vmatpush1.msra.mxu0 %v2436
          %2511 = vmatprep.subr.mxu0 0.0
          %2512 = vmatpush2.msra.mxu0 0.0
          %2513 = vmatprep.subr.mxu0 0.0
          %2514 = vmatpush2.msra.mxu0 0.0
          %2515 = vmatprep.subr.mxu0 0.0
          %2516 = vmatpush2.msra.mxu0 0.0
          %2517 = vmatprep.subr.mxu0 0.0
          %2518 = vmatpush2.msra.mxu0 0.0
          %2519 = vmatprep.subr.mxu0 0.0
          %2520 = vmatpush2.msra.mxu0 0.0
          %2521 = vmatprep.subr.mxu0 0.0
          %2522 = vmatpush2.msra.mxu0 0.0
          %2523 = vmatprep.subr.mxu0 0.0
          %2524 = vmatpush2.msra.mxu0 0.0
          %2525 = vmatprep.subr.mxu0 0.0
          %2526 = vmatpush2.msra.mxu0 0.0
          %2527 = vmatprep.subr.mxu0 0.0
          %2528 = vmatpush2.msra.mxu0 0.0
          %2529 = vmatprep.subr.mxu0 0.0
          %2530 = vmatpush2.msra.mxu0 0.0
          %2531 = vmatprep.subr.mxu0 0.0
          %2532 = vmatpush2.msra.mxu0 0.0
          %2533 = vmatprep.subr.mxu0 0.0
          %2534 = vmatpush2.msra.mxu0 0.0
          %2535 = vmatprep.subr.mxu0 0.0
          %2536 = vmatpush2.msra.mxu0 0.0
          %2537 = vmatprep.subr.mxu0 0.0
          %2538 = vmatpush2.msra.mxu0 0.0
          %2539 = vmatprep.subr.mxu0 0.0
          %2540 = vmatpush2.msra.mxu0 0.0
          %2541 = vmatprep.subr.mxu0 0.0
          %2542 = vmatpush2.msra.mxu0 0.0
          %2543 = vmatprep.mubr.f32.mxu0 0.0
          %2544 = vmatmul.mubr.f32.gmra.mxu0 %v2435
          %v2545 = vpop.f32.mrf.mxu0
          %v2546 = vadd.f32 %v2478, %v2545
          %v2547 = vpop.f32.mrf.mxu0
          %2548 = vdwg.mxu0
          %2550 = vset.pattern.permute.xlu0 0
          %2551 = vperm.xlu0 %2550, %v2433
          %v2552 = vpop.permute.xlu0 %2551
          %v2554 = vrcp.pop %v2552
          %v2555 = vmul.f32 %v2546, %v2554
          %v2556 = vld [vmem:[#allocation12] sm:$0xff]
          %v2557 = vld [vmem:[#allocation12 + $0x8] sm:$0xff]
          %v2558 = vld [vmem:[#allocation12 + $0x10] sm:$0xff]
          %v2559 = vld [vmem:[#allocation12 + $0x18] sm:$0xff]
          %v2560 = vld [vmem:[#allocation12 + $0x20] sm:$0xff]
          %v2561 = vld [vmem:[#allocation12 + $0x28] sm:$0xff]
          %v2562 = vld [vmem:[#allocation12 + $0x30] sm:$0xff]
          %v2563 = vld [vmem:[#allocation12 + $0x38] sm:$0xff]
          %v2564 = vld [vmem:[#allocation12 + $0x40] sm:$0xff]
          %v2565 = vld [vmem:[#allocation12 + $0x48] sm:$0xff]
          %v2566 = vld [vmem:[#allocation12 + $0x50] sm:$0xff]
          %v2567 = vld [vmem:[#allocation12 + $0x58] sm:$0xff]
          %v2568 = vld [vmem:[#allocation12 + $0x60] sm:$0xff]
          %v2569 = vld [vmem:[#allocation12 + $0x68] sm:$0xff]
          %v2570 = vld [vmem:[#allocation12 + $0x70] sm:$0xff]
          %v2571 = vld [vmem:[#allocation12 + $0x78] sm:$0xff]
          %v2572 = vld [vmem:[%s6] sm:$0x1]
          %v2574 = vlaneseq
          %v2575 = vshrl.u32 %v2574, 7
          %v2576 = vsub.s32 0, %v2575
          %v2577 = vrot.slane %v2572, %v2576
          %2579 = vmatprep.subr.mxu0 0.0
          %2580 = vmatpush1.msra.mxu0 %v2571
          %2581 = vmatprep.subr.mxu0 0.0
          %2582 = vmatpush1.msra.mxu0 %v2570
          %2583 = vmatprep.subr.mxu0 0.0
          %2584 = vmatpush1.msra.mxu0 %v2569
          %2585 = vmatprep.subr.mxu0 0.0
          %2586 = vmatpush1.msra.mxu0 %v2568
          %2587 = vmatprep.subr.mxu0 0.0
          %2588 = vmatpush1.msra.mxu0 %v2567
          %2589 = vmatprep.subr.mxu0 0.0
          %2590 = vmatpush1.msra.mxu0 %v2566
          %2591 = vmatprep.subr.mxu0 0.0
          %2592 = vmatpush1.msra.mxu0 %v2565
          %2593 = vmatprep.subr.mxu0 0.0
          %2594 = vmatpush1.msra.mxu0 %v2564
          %2595 = vmatprep.subr.mxu0 0.0
          %2596 = vmatpush1.msra.mxu0 %v2563
          %2597 = vmatprep.subr.mxu0 0.0
          %2598 = vmatpush1.msra.mxu0 %v2562
          %2599 = vmatprep.subr.mxu0 0.0
          %2600 = vmatpush1.msra.mxu0 %v2561
          %2601 = vmatprep.subr.mxu0 0.0
          %2602 = vmatpush1.msra.mxu0 %v2560
          %2603 = vmatprep.subr.mxu0 0.0
          %2604 = vmatpush1.msra.mxu0 %v2559
          %2605 = vmatprep.subr.mxu0 0.0
          %2606 = vmatpush1.msra.mxu0 %v2558
          %2607 = vmatprep.subr.mxu0 0.0
          %2608 = vmatpush1.msra.mxu0 %v2557
          %2609 = vmatprep.subr.mxu0 0.0
          %2610 = vmatpush1.msra.mxu0 %v2556
          %2611 = vmatprep.subr.mxu0 0.0
          %2612 = vmatpush2.msra.mxu0 0.0
          %2613 = vmatprep.subr.mxu0 0.0
          %2614 = vmatpush2.msra.mxu0 0.0
          %2615 = vmatprep.subr.mxu0 0.0
          %2616 = vmatpush2.msra.mxu0 0.0
          %2617 = vmatprep.subr.mxu0 0.0
          %2618 = vmatpush2.msra.mxu0 0.0
          %2619 = vmatprep.subr.mxu0 0.0
          %2620 = vmatpush2.msra.mxu0 0.0
          %2621 = vmatprep.subr.mxu0 0.0
          %2622 = vmatpush2.msra.mxu0 0.0
          %2623 = vmatprep.subr.mxu0 0.0
          %2624 = vmatpush2.msra.mxu0 0.0
          %2625 = vmatprep.subr.mxu0 0.0
          %2626 = vmatpush2.msra.mxu0 0.0
          %2627 = vmatprep.subr.mxu0 0.0
          %2628 = vmatpush2.msra.mxu0 0.0
          %2629 = vmatprep.subr.mxu0 0.0
          %2630 = vmatpush2.msra.mxu0 0.0
          %2631 = vmatprep.subr.mxu0 0.0
          %2632 = vmatpush2.msra.mxu0 0.0
          %2633 = vmatprep.subr.mxu0 0.0
          %2634 = vmatpush2.msra.mxu0 0.0
          %2635 = vmatprep.subr.mxu0 0.0
          %2636 = vmatpush2.msra.mxu0 0.0
          %2637 = vmatprep.subr.mxu0 0.0
          %2638 = vmatpush2.msra.mxu0 0.0
          %2639 = vmatprep.subr.mxu0 0.0
          %2640 = vmatpush2.msra.mxu0 0.0
          %2641 = vmatprep.subr.mxu0 0.0
          %2642 = vmatpush2.msra.mxu0 0.0
          %2643 = vmatprep.mubr.f32.mxu0 0.0
          %2644 = vmatmul.mubr.f32.gmra.mxu0 %v2555
          %v2645 = vpop.f32.mrf.mxu0
          %v2646 = vadd.f32 %v2577, %v2645
          %v2647 = vpop.f32.mrf.mxu0
          %2648 = vdwg.mxu0
          %v2649 = vtanh.pop %v2646
          %v2650 = vld [vmem:[#allocation14] sm:$0xff]
          %v2651 = vld [vmem:[#allocation14 + $0x8] sm:$0xff]
          %v2652 = vld [vmem:[#allocation14 + $0x10] sm:$0xff]
          %v2653 = vld [vmem:[#allocation14 + $0x18] sm:$0xff]
          %v2654 = vld [vmem:[#allocation14 + $0x20] sm:$0xff]
          %v2655 = vld [vmem:[#allocation14 + $0x28] sm:$0xff]
          %v2656 = vld [vmem:[#allocation14 + $0x30] sm:$0xff]
          %v2657 = vld [vmem:[#allocation14 + $0x38] sm:$0xff]
          %v2658 = vld [vmem:[#allocation14 + $0x40] sm:$0xff]
          %v2659 = vld [vmem:[#allocation14 + $0x48] sm:$0xff]
          %v2660 = vld [vmem:[#allocation14 + $0x50] sm:$0xff]
          %v2661 = vld [vmem:[#allocation14 + $0x58] sm:$0xff]
          %v2662 = vld [vmem:[#allocation14 + $0x60] sm:$0xff]
          %v2663 = vld [vmem:[#allocation14 + $0x68] sm:$0xff]
          %v2664 = vld [vmem:[#allocation14 + $0x70] sm:$0xff]
          %v2665 = vld [vmem:[#allocation14 + $0x78] sm:$0xff]
          %v2666 = vld [vmem:[%s9] sm:$0x1]
          %v2668 = vlaneseq
          %v2669 = vshrl.u32 %v2668, 7
          %v2670 = vsub.s32 0, %v2669
          %v2671 = vrot.slane %v2666, %v2670
          %2673 = vmatprep.subr.mxu0 0.0
          %2674 = vmatpush1.msra.mxu0 %v2665
          %2675 = vmatprep.subr.mxu0 0.0
          %2676 = vmatpush1.msra.mxu0 %v2664
          %2677 = vmatprep.subr.mxu0 0.0
          %2678 = vmatpush1.msra.mxu0 %v2663
          %2679 = vmatprep.subr.mxu0 0.0
          %2680 = vmatpush1.msra.mxu0 %v2662
          %2681 = vmatprep.subr.mxu0 0.0
          %2682 = vmatpush1.msra.mxu0 %v2661
          %2683 = vmatprep.subr.mxu0 0.0
          %2684 = vmatpush1.msra.mxu0 %v2660
          %2685 = vmatprep.subr.mxu0 0.0
          %2686 = vmatpush1.msra.mxu0 %v2659
          %2687 = vmatprep.subr.mxu0 0.0
          %2688 = vmatpush1.msra.mxu0 %v2658
          %2689 = vmatprep.subr.mxu0 0.0
          %2690 = vmatpush1.msra.mxu0 %v2657
          %2691 = vmatprep.subr.mxu0 0.0
          %2692 = vmatpush1.msra.mxu0 %v2656
          %2693 = vmatprep.subr.mxu0 0.0
          %2694 = vmatpush1.msra.mxu0 %v2655
          %2695 = vmatprep.subr.mxu0 0.0
          %2696 = vmatpush1.msra.mxu0 %v2654
          %2697 = vmatprep.subr.mxu0 0.0
          %2698 = vmatpush1.msra.mxu0 %v2653
          %2699 = vmatprep.subr.mxu0 0.0
          %2700 = vmatpush1.msra.mxu0 %v2652
          %2701 = vmatprep.subr.mxu0 0.0
          %2702 = vmatpush1.msra.mxu0 %v2651
          %2703 = vmatprep.subr.mxu0 0.0
          %2704 = vmatpush1.msra.mxu0 %v2650
          %2705 = vmatprep.subr.mxu0 0.0
          %2706 = vmatpush2.msra.mxu0 0.0
          %2707 = vmatprep.subr.mxu0 0.0
          %2708 = vmatpush2.msra.mxu0 0.0
          %2709 = vmatprep.subr.mxu0 0.0
          %2710 = vmatpush2.msra.mxu0 0.0
          %2711 = vmatprep.subr.mxu0 0.0
          %2712 = vmatpush2.msra.mxu0 0.0
          %2713 = vmatprep.subr.mxu0 0.0
          %2714 = vmatpush2.msra.mxu0 0.0
          %2715 = vmatprep.subr.mxu0 0.0
          %2716 = vmatpush2.msra.mxu0 0.0
          %2717 = vmatprep.subr.mxu0 0.0
          %2718 = vmatpush2.msra.mxu0 0.0
          %2719 = vmatprep.subr.mxu0 0.0
          %2720 = vmatpush2.msra.mxu0 0.0
          %2721 = vmatprep.subr.mxu0 0.0
          %2722 = vmatpush2.msra.mxu0 0.0
          %2723 = vmatprep.subr.mxu0 0.0
          %2724 = vmatpush2.msra.mxu0 0.0
          %2725 = vmatprep.subr.mxu0 0.0
          %2726 = vmatpush2.msra.mxu0 0.0
          %2727 = vmatprep.subr.mxu0 0.0
          %2728 = vmatpush2.msra.mxu0 0.0
          %2729 = vmatprep.subr.mxu0 0.0
          %2730 = vmatpush2.msra.mxu0 0.0
          %2731 = vmatprep.subr.mxu0 0.0
          %2732 = vmatpush2.msra.mxu0 0.0
          %2733 = vmatprep.subr.mxu0 0.0
          %2734 = vmatpush2.msra.mxu0 0.0
          %2735 = vmatprep.subr.mxu0 0.0
          %2736 = vmatpush2.msra.mxu0 0.0
          %2737 = vmatprep.mubr.f32.mxu0 0.0
          %2738 = vmatmul.mubr.f32.gmra.mxu0 %v2649
          %v2739 = vpop.f32.mrf.mxu0
          %v2740 = vadd.f32 %v2671, %v2739
          %v2741 = vpop.f32.mrf.mxu0
          %2742 = vdwg.mxu0
          %2743 = vst [vmem:[%s469] sm:$0xff] %v2740
        $region88: #{tpu_custom_call.1} parent=55 // pred_fallthru
          _
        %s2744 = sand.u32 %s265, 1
        %s2745 = scalar_lea.sflag [#allocation8], %s2744
        %s2746 = sand.u32 %s265, 1
        %s2747 = smul.addr %s2746, 8
        %s2748 = scalar_lea.vmem [#allocation15], %s2747
        // Predicated region
        $region89: #{tpu_custom_call.1} parent=55 // pred_check
          %p2749 = pneg %p275
        $region90: #{tpu_custom_call.1} parent=55 // pred_check_branch
          %2751 = sbr.rel (%p2749) target = $region92
        $region91: #{tpu_custom_call.1} parent=55 // pred_region
          %s2753 = ssub.s32 128, 128
          %2754 = vsyncadd %s2745, %s2753
          %s2755 = smul.addr %s41, 128
          %s2756 = scalar_lea.hbm %s10, %s2755
          %s2758 = sshll.u32 %s2748, 4
          %s2759 = int_to_ptr.vmem [resolvable:$true] %s2758
          %2761 = dma.vmem_to_hbm [thread:$0]  %s2759, 128, %s2756, %s2745
        $region92: #{tpu_custom_call.1} parent=55 // pred_fallthru
          _
      $region56: #{tpu_custom_call.1} parent=5 // pred_fallthru
        _
      %p2762 = scmp.le.s32.totalorder 2, %s32
      // Predicated region
      $region93: #{tpu_custom_call.1} parent=5 // pred_check
        %p2763 = pneg %p2762
      $region94: #{tpu_custom_call.1} parent=5 // pred_check_branch
        %2765 = sbr.rel (%p2763) target = $region96
      $region95: #{tpu_custom_call.1} parent=5 // pred_region
        %s2766 = ssub.s32 %s32, 2
        // Predicated region
        $region97: #{tpu_custom_call.1} parent=95 // pred_check
          %p2767 = pneg %p281
        $region98: #{tpu_custom_call.1} parent=95 // pred_check_branch
          %2769 = sbr.rel (%p2767) target = $region100
        $region99: #{tpu_custom_call.1} parent=95 // pred_region
          %s2770 = sand.u32 %s266, 1
          %s2771 = scalar_lea.sflag [#allocation8], %s2770
          %s2772 = sand.u32 %s266, 1
          %s2773 = smul.addr %s2772, 8
          %s2774 = scalar_lea.vmem [#allocation15], %s2773
          %2775 = dma.done %s2771, 128
        $region100: #{tpu_custom_call.1} parent=95 // pred_fallthru
          _
      $region96: #{tpu_custom_call.1} parent=5 // pred_fallthru
        _
    $region6: #{tpu_custom_call.1} parent=1 // loop_footer
      %s36 = sadd.s32 1, %s32
    $region7: #{tpu_custom_call.1} parent=1 // loop_footer_branch
      %31 = sbr.rel target = $region3
    $region8: #{tpu_custom_call.1} parent=1 // loop_exit
      _
    %2776 = vsyncpa [#allocation7], 1
    %s2777 = scalar_lea.sflag [#allocation7], 1
    %2778 = vsyncpa %s2777, 1
    %2779 = vsyncpa [#allocation10], 1
    %s2780 = scalar_lea.sflag [#allocation10], 1
    %2781 = vsyncpa %s2780, 1
    %2782 = vsyncpa [#allocation13], 1
    %2783 = vsyncpa [#allocation8], 1
    %s2784 = scalar_lea.sflag [#allocation8], 1
    %2785 = vsyncpa %s2784, 1

</llo_original>
